<compile_context>
chip_gen: v6e
topology: v6e:2x2x1
jax: 0.10.0
libtpu: 0.0.40
codegen_flags: <defaults>
</compile_context>

<pallas_src>
import functools

import jax
import jax.numpy as jnp
from jax import lax
from jax.experimental import pallas as pl
from jax.experimental.pallas import tpu as pltpu


KH = KW = 5  # both convs in the example are 5x5, stride 1, no padding


def _round_up(x, m):
    return (x + m - 1) // m * m


# ------------------------------ Pallas kernel --------------------------------
def _fused_conv_relu_x2_kernel(p1_ref, w1_ref, b1_ref, w2_ref, b2_ref, o_ref,
                               *, ow1, oh2, ow2, m2, kh, kw):
    """relu(conv2(relu(conv1(x)))) for one image, fully resident in VMEM.

    p1_ref : (M1, K1)            bf16  im2col patches for conv1 (K1 = C1*KH*KW)
    w1_ref : (K1, OC1P)          bf16  OC1 zero-padded to 32
    b1_ref : (1, OC1P)           f32
    w2_ref : (KH*KW*OC1P, OC2)   bf16  row = tap*OC1P + c1 (padded rows zero)
    b2_ref : (1, OC2)            f32
    o_ref  : (OH2*OW2, OC2)      f32   valid conv2 outputs, row = r*OW2 + c
    """
    # ---- layers 1+2 of the Sequential: Conv2d(1,20,5) + ReLU.
    a1 = jnp.dot(p1_ref[...], w1_ref[...], preferred_element_type=jnp.float32)
    a1 = jnp.maximum(a1 + b1_ref[...], 0.0).astype(w2_ref.dtype)  # (M1, OC1P)

    # ---- layers 3+4: Conv2d(20,64,5) + ReLU.  Rows of `a1` are laid out as
    # p = oh1*OW1 + ow1, so tap (i, j) needs the row-shifted slice
    # a1[s : s+m2] with s = i*OW1 + j.  Concatenating all taps along lanes
    # builds the conv2 im2col LHS in VMEM and conv2 becomes a single MXU
    # matmul with K = KH*KW*OC1P (instead of 25 tiny K=20 dots).
    lhs = jnp.concatenate(
        [a1[i * ow1 + j: i * ow1 + j + m2, :]
         for i in range(kh) for j in range(kw)], axis=1)          # (m2, K2)
    acc = jnp.dot(lhs, w2_ref[...], preferred_element_type=jnp.float32)
    acc = jnp.maximum(acc + b2_ref[...], 0.0)                     # (m2, OC2)

    # In-kernel crop: keep only rows p = r*OW1 + c with c < OW2, so no dead
    # rows hit HBM and no XLA slice is needed after the kernel.
    o_ref[...] = jnp.concatenate(
        [acc[r * ow1: r * ow1 + ow2, :] for r in range(oh2)],
        axis=0).astype(o_ref.dtype)                               # (OH2*OW2, OC2)


# ------------------------------- glue (JAX) -----------------------------------
def _im2col(x_nhwc, kh, kw):
    """Channels-last patch matrix for a stride-1 VALID conv.

    x_nhwc: (N, H, W, C) -> (N, OH*OW, C*KH*KW); column order (c, i, j)
    matches weight.reshape(OC, C*KH*KW).
    """
    n, h, w, c = x_nhwc.shape
    oh, ow = h - kh + 1, w - kw + 1
    taps = [x_nhwc[:, i:i + oh, j:j + ow, :]
            for i in range(kh) for j in range(kw)]
    p = jnp.stack(taps, axis=-1)                      # (N, OH, OW, C, KH*KW)
    return p.reshape(n, oh * ow, c * kh * kw), (oh, ow)


def prepare_params(params):
    """One-time weight prep (hoisted out of the per-forward path).

    Pads OC1 -> 32 so conv2 tap slices concatenate at 32-lane offsets and
    lays conv2 weights out as one (KH*KW*OC1P, OC2) contraction slab.
    """
    (w1, b1), (w2, b2) = params
    oc1, c1, kh, kw = w1.shape
    oc2 = w2.shape[0]
    oc1p = _round_up(oc1, 32)

    w1_mat = w1.reshape(oc1, c1 * kh * kw).T                      # (K1, OC1)
    w1_mat = jnp.pad(w1_mat, ((0, 0), (0, oc1p - oc1))).astype(jnp.bfloat16)
    b1r = jnp.pad(b1, (0, oc1p - oc1)).reshape(1, oc1p).astype(jnp.float32)

    w2_t = jnp.transpose(w2, (2, 3, 1, 0))                        # (KH,KW,OC1,OC2)
    w2_t = jnp.pad(w2_t, ((0, 0), (0, 0), (0, oc1p - oc1), (0, 0)))
    w2_mat = w2_t.reshape(kh * kw * oc1p, oc2).astype(jnp.bfloat16)
    b2r = b2.reshape(1, oc2).astype(jnp.float32)
    return w1_mat, b1r, w2_mat, b2r


@jax.jit
def sequential_forward(x, prepped):
    """Sequential(Conv2d(1,20,5), ReLU, Conv2d(20,64,5), ReLU).forward.

    x: (N, 1, H, W) f32 NCHW (PyTorch layout) -> (N, 64, H-8, W-8) f32 NCHW.
    """
    w1_mat, b1r, w2_mat, b2r = prepped
    k1, oc1p = w1_mat.shape
    k2, oc2 = w2_mat.shape
    n = x.shape[0]

    # conv1 im2col, channels-last (fused by XLA under jit; C1 == 1 so the
    # expansion is tiny -- conv2's im2col is built inside the kernel).
    x_nhwc = jnp.transpose(x, (0, 2, 3, 1))
    p1, (oh1, ow1) = _im2col(x_nhwc, KH, KW)          # (N, OH1*OW1, K1)
    p1 = p1.astype(jnp.bfloat16)
    m1 = oh1 * ow1
    oh2, ow2 = oh1 - KH + 1, ow1 - KW + 1
    # Only accumulate rows that can feed a valid output; with this m2 the
    # deepest tap slice ends exactly at m1, so no zero padding of p1 is needed.
    m2 = (oh2 - 1) * ow1 + ow2

    kernel = functools.partial(_fused_conv_relu_x2_kernel,
                               ow1=ow1, oh2=oh2, ow2=ow2, m2=m2, kh=KH, kw=KW)
    out = pl.pallas_call(
        kernel,
        out_shape=jax.ShapeDtypeStruct((n, oh2 * ow2, oc2), jnp.float32),
        grid=(n,),
        in_specs=[
            pl.BlockSpec((None, m1, k1), lambda b: (b, 0, 0)),
            pl.BlockSpec((k1, oc1p), lambda b: (0, 0)),
            pl.BlockSpec((1, oc1p), lambda b: (0, 0)),
            pl.BlockSpec((k2, oc2), lambda b: (0, 0)),
            pl.BlockSpec((1, oc2), lambda b: (0, 0)),
        ],
        out_specs=pl.BlockSpec((None, oh2 * ow2, oc2), lambda b: (b, 0, 0)),
        compiler_params=pltpu.CompilerParams(
            dimension_semantics=("parallel",)),       # batch across v7x's 2 TCs
    )(p1, w1_mat, b1r, w2_mat, b2r)

    # Kernel already cropped to valid rows; only the layout conversion back to
    # PyTorch NCHW remains (reshape is free, transpose is one XLA op).
    out = out.reshape(n, oh2, ow2, oc2)
    return jnp.transpose(out, (0, 3, 1, 2))


# -------------------------------- reference -----------------------------------
def _conv_relu_ref(x, w, b, operand_dtype):
    y = lax.conv_general_dilated(
        x.astype(operand_dtype), w.astype(operand_dtype),
        window_strides=(1, 1), padding='VALID',
        dimension_numbers=('NCHW', 'OIHW', 'NCHW'),
        preferred_element_type=jnp.float32)
    return jnp.maximum(y + b[None, :, None, None], 0.0)


def _ref_forward(x, params, operand_dtype=jnp.float32):
    (w1, b1), (w2, b2) = params
    y = _conv_relu_ref(x, w1, b1, operand_dtype)
    return _conv_relu_ref(y, w2, b2, operand_dtype)


# ----------------------------------- main --------------------------------------
if __name__ == "__main__":
    key = jax.random.PRNGKey(0)
    k_x, k_w1, k_b1, k_w2, k_b2 = jax.random.split(key, 5)

    # Small NCHW input consistent with Conv2d(1, 20, 5) -> Conv2d(20, 64, 5).
    x = jax.random.normal(k_x, (2, 1, 16, 16), dtype=jnp.float32)
    w1 = jax.random.normal(k_w1, (20, 1, 5, 5), dtype=jnp.float32) * 0.1
    b1 = jax.random.normal(k_b1, (20,), dtype=jnp.float32) * 0.1
    w2 = jax.random.normal(k_w2, (64, 20, 5, 5), dtype=jnp.float32) * 0.05
    b2 = jax.random.normal(k_b2, (64,), dtype=jnp.float32) * 0.1
    params = ((w1, b1), (w2, b2))

    prepped = prepare_params(params)          # hoisted one-time weight prep
    out = jax.block_until_ready(sequential_forward(x, prepped))
    assert out.shape == (2, 64, 8, 8), out.shape

    # Tight check against a reference at matching precision
    # (bf16 operands, f32 accumulation).
    ref_bf16 = jax.block_until_ready(_ref_forward(x, params, jnp.bfloat16))
    assert jnp.allclose(out, ref_bf16, atol=5e-3, rtol=5e-3), (
        "mismatch vs bf16 reference, max err "
        f"{float(jnp.max(jnp.abs(out - ref_bf16)))}")

    # Sanity check against the full-f32 PyTorch-semantics reference
    # (tolerance reflects bf16 matmul operands).
    ref_f32 = jax.block_until_ready(_ref_forward(x, params, jnp.float32))
    assert jnp.allclose(out, ref_f32, atol=5e-2, rtol=5e-2), (
        "mismatch vs f32 reference, max err "
        f"{float(jnp.max(jnp.abs(out - ref_f32)))}")

    print("KERNEL_OK")
</pallas_src>

<mosaic_0001>
module attributes {stable_mosaic.version = 11 : i64} {
  func.func @_fused_conv_relu_x2_kernel(%arg0: i32, %arg1: memref<1x144x25xbf16, #tpu.memory_space<vmem>>, %arg2: memref<25x32xbf16, #tpu.memory_space<vmem>>, %arg3: memref<1x32xf32, #tpu.memory_space<vmem>>, %arg4: memref<800x64xbf16, #tpu.memory_space<vmem>>, %arg5: memref<1x64xf32, #tpu.memory_space<vmem>>, %arg6: memref<1x64x64xf32, #tpu.memory_space<vmem>>) attributes {dimension_semantics = [#tpu.dimension_semantics<parallel>], iteration_bounds = array<i64: 2>, scalar_prefetch = 0 : i64, scratch_operands = 0 : i64, tpu.core_type = #tpu.core_type<tc>, window_params = [{transform_indices = @transform_0, window_bounds = array<i64: 1, 144, 25>}, {pipeline_mode = #tpu.pipeline_mode<synchronous>, transform_indices = @transform_1, window_bounds = array<i64: 25, 32>}, {pipeline_mode = #tpu.pipeline_mode<synchronous>, transform_indices = @transform_2, window_bounds = array<i64: 1, 32>}, {pipeline_mode = #tpu.pipeline_mode<synchronous>, transform_indices = @transform_3, window_bounds = array<i64: 800, 64>}, {pipeline_mode = #tpu.pipeline_mode<synchronous>, transform_indices = @transform_4, window_bounds = array<i64: 1, 64>}, {transform_indices = @transform_5, window_bounds = array<i64: 1, 64, 64>}]} {
    %c0 = arith.constant 0 : index
    %c0_0 = arith.constant 0 : index
    %c0_1 = arith.constant 0 : index
    %0 = vector.load %arg1[%c0, %c0_0, %c0_1] : memref<1x144x25xbf16, #tpu.memory_space<vmem>>, vector<1x144x25xbf16>
    %1 = vector.shape_cast %0 : vector<1x144x25xbf16> to vector<144x25xbf16>
    %c0_2 = arith.constant 0 : index
    %c0_3 = arith.constant 0 : index
    %2 = vector.load %arg2[%c0_2, %c0_3] : memref<25x32xbf16, #tpu.memory_space<vmem>>, vector<25x32xbf16>
    %cst = arith.constant dense<0.000000e+00> : vector<144x32xf32>
    %3 = tpu.matmul %1, %2, %cst {dimension_numbers = #tpu.dot_dimension_numbers<[1], [0], [0], [1], [0, 0, 1, 1], [], []>} : vector<144x25xbf16>, vector<25x32xbf16>, vector<144x32xf32> -> vector<144x32xf32>
    %c0_4 = arith.constant 0 : index
    %c0_5 = arith.constant 0 : index
    %4 = vector.load %arg3[%c0_4, %c0_5] : memref<1x32xf32, #tpu.memory_space<vmem>>, vector<1x32xf32>
    %5 = vector.broadcast %4 : vector<1x32xf32> to vector<144x32xf32>
    %6 = arith.addf %3, %5 : vector<144x32xf32>
    %cst_6 = arith.constant 0.000000e+00 : f32
    %7 = vector.broadcast %cst_6 : f32 to vector<144x32xf32>
    %8 = arith.maximumf %6, %7 : vector<144x32xf32>
    %9 = arith.truncf %8 : vector<144x32xf32> to vector<144x32xbf16>
    %10 = vector.extract_strided_slice %9 {offsets = [0, 0], sizes = [92, 32], strides = [1, 1]} : vector<144x32xbf16> to vector<92x32xbf16>
    %11 = vector.extract_strided_slice %9 {offsets = [1, 0], sizes = [92, 32], strides = [1, 1]} : vector<144x32xbf16> to vector<92x32xbf16>
    %12 = vector.extract_strided_slice %9 {offsets = [2, 0], sizes = [92, 32], strides = [1, 1]} : vector<144x32xbf16> to vector<92x32xbf16>
    %13 = vector.extract_strided_slice %9 {offsets = [3, 0], sizes = [92, 32], strides = [1, 1]} : vector<144x32xbf16> to vector<92x32xbf16>
    %14 = vector.extract_strided_slice %9 {offsets = [4, 0], sizes = [92, 32], strides = [1, 1]} : vector<144x32xbf16> to vector<92x32xbf16>
    %15 = vector.extract_strided_slice %9 {offsets = [12, 0], sizes = [92, 32], strides = [1, 1]} : vector<144x32xbf16> to vector<92x32xbf16>
    %16 = vector.extract_strided_slice %9 {offsets = [13, 0], sizes = [92, 32], strides = [1, 1]} : vector<144x32xbf16> to vector<92x32xbf16>
    %17 = vector.extract_strided_slice %9 {offsets = [14, 0], sizes = [92, 32], strides = [1, 1]} : vector<144x32xbf16> to vector<92x32xbf16>
    %18 = vector.extract_strided_slice %9 {offsets = [15, 0], sizes = [92, 32], strides = [1, 1]} : vector<144x32xbf16> to vector<92x32xbf16>
    %19 = vector.extract_strided_slice %9 {offsets = [16, 0], sizes = [92, 32], strides = [1, 1]} : vector<144x32xbf16> to vector<92x32xbf16>
    %20 = vector.extract_strided_slice %9 {offsets = [24, 0], sizes = [92, 32], strides = [1, 1]} : vector<144x32xbf16> to vector<92x32xbf16>
    %21 = vector.extract_strided_slice %9 {offsets = [25, 0], sizes = [92, 32], strides = [1, 1]} : vector<144x32xbf16> to vector<92x32xbf16>
    %22 = vector.extract_strided_slice %9 {offsets = [26, 0], sizes = [92, 32], strides = [1, 1]} : vector<144x32xbf16> to vector<92x32xbf16>
    %23 = vector.extract_strided_slice %9 {offsets = [27, 0], sizes = [92, 32], strides = [1, 1]} : vector<144x32xbf16> to vector<92x32xbf16>
    %24 = vector.extract_strided_slice %9 {offsets = [28, 0], sizes = [92, 32], strides = [1, 1]} : vector<144x32xbf16> to vector<92x32xbf16>
    %25 = vector.extract_strided_slice %9 {offsets = [36, 0], sizes = [92, 32], strides = [1, 1]} : vector<144x32xbf16> to vector<92x32xbf16>
    %26 = vector.extract_strided_slice %9 {offsets = [37, 0], sizes = [92, 32], strides = [1, 1]} : vector<144x32xbf16> to vector<92x32xbf16>
    %27 = vector.extract_strided_slice %9 {offsets = [38, 0], sizes = [92, 32], strides = [1, 1]} : vector<144x32xbf16> to vector<92x32xbf16>
    %28 = vector.extract_strided_slice %9 {offsets = [39, 0], sizes = [92, 32], strides = [1, 1]} : vector<144x32xbf16> to vector<92x32xbf16>
    %29 = vector.extract_strided_slice %9 {offsets = [40, 0], sizes = [92, 32], strides = [1, 1]} : vector<144x32xbf16> to vector<92x32xbf16>
    %30 = vector.extract_strided_slice %9 {offsets = [48, 0], sizes = [92, 32], strides = [1, 1]} : vector<144x32xbf16> to vector<92x32xbf16>
    %31 = vector.extract_strided_slice %9 {offsets = [49, 0], sizes = [92, 32], strides = [1, 1]} : vector<144x32xbf16> to vector<92x32xbf16>
    %32 = vector.extract_strided_slice %9 {offsets = [50, 0], sizes = [92, 32], strides = [1, 1]} : vector<144x32xbf16> to vector<92x32xbf16>
    %33 = vector.extract_strided_slice %9 {offsets = [51, 0], sizes = [92, 32], strides = [1, 1]} : vector<144x32xbf16> to vector<92x32xbf16>
    %34 = vector.extract_strided_slice %9 {offsets = [52, 0], sizes = [92, 32], strides = [1, 1]} : vector<144x32xbf16> to vector<92x32xbf16>
    %35 = tpu.concatenate %10, %11, %12, %13, %14, %15, %16, %17, %18, %19, %20, %21, %22, %23, %24, %25 in 1 : vector<92x32xbf16>, vector<92x32xbf16>, vector<92x32xbf16>, vector<92x32xbf16>, vector<92x32xbf16>, vector<92x32xbf16>, vector<92x32xbf16>, vector<92x32xbf16>, vector<92x32xbf16>, vector<92x32xbf16>, vector<92x32xbf16>, vector<92x32xbf16>, vector<92x32xbf16>, vector<92x32xbf16>, vector<92x32xbf16>, vector<92x32xbf16> -> vector<92x512xbf16>
    %36 = tpu.concatenate %26, %27, %28, %29, %30, %31, %32, %33, %34 in 1 : vector<92x32xbf16>, vector<92x32xbf16>, vector<92x32xbf16>, vector<92x32xbf16>, vector<92x32xbf16>, vector<92x32xbf16>, vector<92x32xbf16>, vector<92x32xbf16>, vector<92x32xbf16> -> vector<92x288xbf16>
    %37 = tpu.concatenate %35, %36 in 1 : vector<92x512xbf16>, vector<92x288xbf16> -> vector<92x800xbf16>
    %c0_7 = arith.constant 0 : index
    %c0_8 = arith.constant 0 : index
    %38 = vector.load %arg4[%c0_7, %c0_8] : memref<800x64xbf16, #tpu.memory_space<vmem>>, vector<800x64xbf16>
    %cst_9 = arith.constant dense<0.000000e+00> : vector<92x64xf32>
    %39 = tpu.matmul %37, %38, %cst_9 {dimension_numbers = #tpu.dot_dimension_numbers<[1], [0], [0], [1], [0, 0, 1, 1], [], []>} : vector<92x800xbf16>, vector<800x64xbf16>, vector<92x64xf32> -> vector<92x64xf32>
    %c0_10 = arith.constant 0 : index
    %c0_11 = arith.constant 0 : index
    %40 = vector.load %arg5[%c0_10, %c0_11] : memref<1x64xf32, #tpu.memory_space<vmem>>, vector<1x64xf32>
    %41 = vector.broadcast %40 : vector<1x64xf32> to vector<92x64xf32>
    %42 = arith.addf %39, %41 : vector<92x64xf32>
    %cst_12 = arith.constant 0.000000e+00 : f32
    %43 = vector.broadcast %cst_12 : f32 to vector<92x64xf32>
    %44 = arith.maximumf %42, %43 : vector<92x64xf32>
    %45 = vector.extract_strided_slice %44 {offsets = [0, 0], sizes = [8, 64], strides = [1, 1]} : vector<92x64xf32> to vector<8x64xf32>
    %46 = vector.extract_strided_slice %44 {offsets = [12, 0], sizes = [8, 64], strides = [1, 1]} : vector<92x64xf32> to vector<8x64xf32>
    %47 = vector.extract_strided_slice %44 {offsets = [24, 0], sizes = [8, 64], strides = [1, 1]} : vector<92x64xf32> to vector<8x64xf32>
    %48 = vector.extract_strided_slice %44 {offsets = [36, 0], sizes = [8, 64], strides = [1, 1]} : vector<92x64xf32> to vector<8x64xf32>
    %49 = vector.extract_strided_slice %44 {offsets = [48, 0], sizes = [8, 64], strides = [1, 1]} : vector<92x64xf32> to vector<8x64xf32>
    %50 = vector.extract_strided_slice %44 {offsets = [60, 0], sizes = [8, 64], strides = [1, 1]} : vector<92x64xf32> to vector<8x64xf32>
    %51 = vector.extract_strided_slice %44 {offsets = [72, 0], sizes = [8, 64], strides = [1, 1]} : vector<92x64xf32> to vector<8x64xf32>
    %52 = vector.extract_strided_slice %44 {offsets = [84, 0], sizes = [8, 64], strides = [1, 1]} : vector<92x64xf32> to vector<8x64xf32>
    %53 = tpu.concatenate %45, %46, %47, %48, %49, %50, %51, %52 in 0 : vector<8x64xf32>, vector<8x64xf32>, vector<8x64xf32>, vector<8x64xf32>, vector<8x64xf32>, vector<8x64xf32>, vector<8x64xf32>, vector<8x64xf32> -> vector<64x64xf32>
    %c0_13 = arith.constant 0 : index
    %c0_14 = arith.constant 0 : index
    %c0_15 = arith.constant 0 : index
    %54 = vector.load %arg6[%c0_13, %c0_14, %c0_15] : memref<1x64x64xf32, #tpu.memory_space<vmem>>, vector<1x64x64xf32>
    %55 = vector.shape_cast %54 : vector<1x64x64xf32> to vector<64x64xf32>
    %56 = vector.shape_cast %53 : vector<64x64xf32> to vector<1x64x64xf32>
    tpu.vector_store %arg6[%c0_13, %c0_14, %c0_15], %56 {strides = array<i32>} : memref<1x64x64xf32, #tpu.memory_space<vmem>>, vector<1x64x64xf32>,
    return
  }
  func.func @transform_0(%arg0: i32) -> (i32, i32, i32) {
    %c0_i32 = arith.constant 0 : i32
    %c0_i32_0 = arith.constant 0 : i32
    %c0_i32_1 = arith.constant 0 : i32
    return %arg0, %c0_i32, %c0_i32_0 : i32, i32, i32
  }
  func.func @transform_1(%arg0: i32) -> (i32, i32) {
    %c0_i32 = arith.constant 0 : i32
    %c0_i32_0 = arith.constant 0 : i32
    %c0_i32_1 = arith.constant 0 : i32
    return %c0_i32, %c0_i32_0 : i32, i32
  }
  func.func @transform_2(%arg0: i32) -> (i32, i32) {
    %c0_i32 = arith.constant 0 : i32
    %c0_i32_0 = arith.constant 0 : i32
    %c0_i32_1 = arith.constant 0 : i32
    return %c0_i32, %c0_i32_0 : i32, i32
  }
  func.func @transform_3(%arg0: i32) -> (i32, i32) {
    %c0_i32 = arith.constant 0 : i32
    %c0_i32_0 = arith.constant 0 : i32
    %c0_i32_1 = arith.constant 0 : i32
    return %c0_i32, %c0_i32_0 : i32, i32
  }
  func.func @transform_4(%arg0: i32) -> (i32, i32) {
    %c0_i32 = arith.constant 0 : i32
    %c0_i32_0 = arith.constant 0 : i32
    %c0_i32_1 = arith.constant 0 : i32
    return %c0_i32, %c0_i32_0 : i32, i32
  }
  func.func @transform_5(%arg0: i32) -> (i32, i32, i32) {
    %c0_i32 = arith.constant 0 : i32
    %c0_i32_0 = arith.constant 0 : i32
    %c0_i32_1 = arith.constant 0 : i32
    return %arg0, %c0_i32, %c0_i32_0 : i32, i32, i32
  }
}

</mosaic_0001>

<llo_original>
// kernel: sequential_forward.1
$region0: #{sequential_forward.1}
  #allocation0 [shape = 'u32[]', space=smem, size = 0x4, offset = 0x4, fixed_abs, tag = 'smem constant byte address 0x4 - core index']
  #allocation1 [shape = 'u32[144,128]{1,0:T(1,128)}', space=vmem, size = 0x12000, scoped, tag = 'internal scratch']
  %s0 = inlined_call_operand.vmem [shape: bf16[2,144,25], index: 0, kind: input, shape index: {}]
  %s1 = inlined_call_operand.vmem [shape: bf16[25,32], index: 1, kind: input, shape index: {}]
  %s2 = inlined_call_operand.vmem [shape: f32[1,32], index: 2, kind: input, shape index: {}]
  %s3 = inlined_call_operand.vmem [shape: bf16[800,64], index: 3, kind: input, shape index: {}]
  %s4 = inlined_call_operand.vmem [shape: f32[1,64], index: 4, kind: input, shape index: {}]
  %s5 = inlined_call_operand.hbm [shape: f32[2,64,64], index: 5, kind: output, shape index: {}]
  %s6 = sld [smem:[#allocation0]]
  $region53: #{sequential_forward.1} parent=0
    _
  %s8 = ssub.s32 1, %s6
  %s9 = scalar_select 0, %s8, %s6
  $region1: #{sequential_forward.1} parent=0
    #allocation2 [shape = 'u8[65536]{0}', space=vmem, size = 0x10000, scoped, tag = 'output window, operand 0']
    #allocation3 [shape = 's32[2]{0}', space=sflag, size = 0x8, scoped, tag = 'scoped memory for sequential_forward.1']
    %10 = vsyncpa [#allocation3], 0
    %s11 = scalar_lea.sflag [#allocation3], 1
    %12 = vsyncpa %s11, 0
    loop: start=0, step=1, limit=4
    $region2: #{sequential_forward.1} parent=1 // loop_pre_header
      _
    $region3: #{sequential_forward.1} parent=1 // loop_header
      %s14 = sphi 0, %s18
      %p15 = scmp.ge.s32.totalorder %s14, 4
      %s24 = sphi 0, %s26
      %s27 = sphi 0, %s24
      %s28 = sphi 0, %s27
      %s44 = sphi 0, %s28
      %s48 = sphi 0, %s48
      %s50 = sphi 0, %s48
      %s51 = sphi 0, %s50
      %s65 = sphi 0, %s51
      %s69 = sphi 0, %s69
      %s71 = sphi 0, %s69
      %s72 = sphi 0, %s71
      %s86 = sphi 0, %s72
      %s90 = sphi 0, %s90
      %s92 = sphi 0, %s90
      %s93 = sphi 0, %s92
      %s107 = sphi 0, %s93
      %s111 = sphi 0, %s111
      %s113 = sphi 0, %s111
      %s114 = sphi 0, %s113
      %s128 = sphi 0, %s114
      %s134 = sphi 0, %s136
      %s137 = sphi 0, %s134
      %s138 = sphi 0, %s137
      %s154 = sphi 0, %s138
    $region4: #{sequential_forward.1} parent=1 // loop_header_branch
      %17 = sbr.rel (%p15) target = $region8
    $region5: #{sequential_forward.1} parent=1 // loop_body
      %s19 = ssub.s32 %s14, 1
      %s20 = ssub.s32 %s14, 2
      %s21 = sadd.s32 %s14, 1
      %s22 = ssub.s32 %s14, %s21
      %p23 = scmp.eq.s32.totalorder %s22, 0
      %s25 = sadd.s32 %s24, 1
      %s26 = scalar_select %p23, %s24, %s25
      %p29 = pneg %p23
      %p30 = scmp.eq.s32.totalorder %s14, 1
      %p31 = por %p29, %p30
      %p32 = scmp.ne.s32.totalorder %s24, %s27
      %p33 = scmp.eq.s32.totalorder %s14, 0
      %p34 = por %p32, %p33
      %p35 = scmp.ne.s32.totalorder %s24, %s27
      %p36 = scmp.eq.s32.totalorder %s19, 1
      %p37 = por %p35, %p36
      %p38 = scmp.ne.s32.totalorder %s27, %s28
      %p39 = scmp.eq.s32.totalorder %s19, 0
      %p40 = por %p38, %p39
      %p41 = scmp.ne.s32.totalorder %s27, %s28
      %p42 = scmp.eq.s32.totalorder %s20, 1
      %p43 = por %p41, %p42
      %p45 = scmp.ne.s32.totalorder %s28, %s44
      %p46 = scmp.eq.s32.totalorder %s20, 0
      %p47 = por %p45, %p46
      %s49 = sadd.s32 %s48, 1
      %p52 = scmp.eq.s32.totalorder %s14, 1
      %p53 = scmp.ne.s32.totalorder %s48, %s50
      %p54 = scmp.eq.s32.totalorder %s14, 0
      %p55 = por %p53, %p54
      %p56 = scmp.ne.s32.totalorder %s48, %s50
      %p57 = scmp.eq.s32.totalorder %s19, 1
      %p58 = por %p56, %p57
      %p59 = scmp.ne.s32.totalorder %s50, %s51
      %p60 = scmp.eq.s32.totalorder %s19, 0
      %p61 = por %p59, %p60
      %p62 = scmp.ne.s32.totalorder %s50, %s51
      %p63 = scmp.eq.s32.totalorder %s20, 1
      %p64 = por %p62, %p63
      %p66 = scmp.ne.s32.totalorder %s51, %s65
      %p67 = scmp.eq.s32.totalorder %s20, 0
      %p68 = por %p66, %p67
      %s70 = sadd.s32 %s69, 1
      %p73 = scmp.eq.s32.totalorder %s14, 1
      %p74 = scmp.ne.s32.totalorder %s69, %s71
      %p75 = scmp.eq.s32.totalorder %s14, 0
      %p76 = por %p74, %p75
      %p77 = scmp.ne.s32.totalorder %s69, %s71
      %p78 = scmp.eq.s32.totalorder %s19, 1
      %p79 = por %p77, %p78
      %p80 = scmp.ne.s32.totalorder %s71, %s72
      %p81 = scmp.eq.s32.totalorder %s19, 0
      %p82 = por %p80, %p81
      %p83 = scmp.ne.s32.totalorder %s71, %s72
      %p84 = scmp.eq.s32.totalorder %s20, 1
      %p85 = por %p83, %p84
      %p87 = scmp.ne.s32.totalorder %s72, %s86
      %p88 = scmp.eq.s32.totalorder %s20, 0
      %p89 = por %p87, %p88
      %s91 = sadd.s32 %s90, 1
      %p94 = scmp.eq.s32.totalorder %s14, 1
      %p95 = scmp.ne.s32.totalorder %s90, %s92
      %p96 = scmp.eq.s32.totalorder %s14, 0
      %p97 = por %p95, %p96
      %p98 = scmp.ne.s32.totalorder %s90, %s92
      %p99 = scmp.eq.s32.totalorder %s19, 1
      %p100 = por %p98, %p99
      %p101 = scmp.ne.s32.totalorder %s92, %s93
      %p102 = scmp.eq.s32.totalorder %s19, 0
      %p103 = por %p101, %p102
      %p104 = scmp.ne.s32.totalorder %s92, %s93
      %p105 = scmp.eq.s32.totalorder %s20, 1
      %p106 = por %p104, %p105
      %p108 = scmp.ne.s32.totalorder %s93, %s107
      %p109 = scmp.eq.s32.totalorder %s20, 0
      %p110 = por %p108, %p109
      %s112 = sadd.s32 %s111, 1
      %p115 = scmp.eq.s32.totalorder %s14, 1
      %p116 = scmp.ne.s32.totalorder %s111, %s113
      %p117 = scmp.eq.s32.totalorder %s14, 0
      %p118 = por %p116, %p117
      %p119 = scmp.ne.s32.totalorder %s111, %s113
      %p120 = scmp.eq.s32.totalorder %s19, 1
      %p121 = por %p119, %p120
      %p122 = scmp.ne.s32.totalorder %s113, %s114
      %p123 = scmp.eq.s32.totalorder %s19, 0
      %p124 = por %p122, %p123
      %p125 = scmp.ne.s32.totalorder %s113, %s114
      %p126 = scmp.eq.s32.totalorder %s20, 1
      %p127 = por %p125, %p126
      %p129 = scmp.ne.s32.totalorder %s114, %s128
      %p130 = scmp.eq.s32.totalorder %s20, 0
      %p131 = por %p129, %p130
      %s132 = ssub.s32 %s14, %s21
      %p133 = scmp.eq.s32.totalorder %s132, 0
      %s135 = sadd.s32 %s134, 1
      %s136 = scalar_select %p133, %s134, %s135
      %p139 = pneg %p133
      %p140 = scmp.eq.s32.totalorder %s14, 1
      %p141 = por %p139, %p140
      %p142 = scmp.ne.s32.totalorder %s134, %s137
      %p143 = scmp.eq.s32.totalorder %s14, 0
      %p144 = por %p142, %p143
      %p145 = scmp.ne.s32.totalorder %s134, %s137
      %p146 = scmp.eq.s32.totalorder %s19, 1
      %p147 = por %p145, %p146
      %p148 = scmp.ne.s32.totalorder %s137, %s138
      %p149 = scmp.eq.s32.totalorder %s19, 0
      %p150 = por %p148, %p149
      %p151 = scmp.ne.s32.totalorder %s137, %s138
      %p152 = scmp.eq.s32.totalorder %s20, 1
      %p153 = por %p151, %p152
      %p155 = scmp.ne.s32.totalorder %s138, %s154
      %p156 = scmp.eq.s32.totalorder %s20, 0
      %p157 = por %p155, %p156
      %p158 = scmp.le.s32.totalorder 1, %s14
      %p159 = scmp.lt.s32.totalorder %s14, 3
      %p160 = pnand %p158, %p159
      %p161 = pneg %p160
      // Predicated region
      $region9: #{sequential_forward.1} parent=5 // pred_check
        _
      $region10: #{sequential_forward.1} parent=5 // pred_check_branch
        %163 = sbr.rel (%p160) target = $region12
      $region11: #{sequential_forward.1} parent=5 // pred_region
        %s164 = ssub.s32 %s14, 1
        // Predicated region
        $region13: #{sequential_forward.1} parent=11 // pred_check
          %p165 = pneg %p61
        $region14: #{sequential_forward.1} parent=11 // pred_check_branch
          %167 = sbr.rel (%p165) target = $region16
        $region15: #{sequential_forward.1} parent=11 // pred_region
          _
        $region16: #{sequential_forward.1} parent=11 // pred_fallthru
          _
        // Predicated region
        $region17: #{sequential_forward.1} parent=11 // pred_check
          %p168 = pneg %p82
        $region18: #{sequential_forward.1} parent=11 // pred_check_branch
          %170 = sbr.rel (%p168) target = $region20
        $region19: #{sequential_forward.1} parent=11 // pred_region
          _
        $region20: #{sequential_forward.1} parent=11 // pred_fallthru
          _
        // Predicated region
        $region21: #{sequential_forward.1} parent=11 // pred_check
          %p171 = pneg %p103
        $region22: #{sequential_forward.1} parent=11 // pred_check_branch
          %173 = sbr.rel (%p171) target = $region24
        $region23: #{sequential_forward.1} parent=11 // pred_region
          _
        $region24: #{sequential_forward.1} parent=11 // pred_fallthru
          _
        // Predicated region
        $region25: #{sequential_forward.1} parent=11 // pred_check
          %p174 = pneg %p124
        $region26: #{sequential_forward.1} parent=11 // pred_check_branch
          %176 = sbr.rel (%p174) target = $region28
        $region27: #{sequential_forward.1} parent=11 // pred_region
          _
        $region28: #{sequential_forward.1} parent=11 // pred_fallthru
          _
      $region12: #{sequential_forward.1} parent=5 // pred_fallthru
        _
      %p177 = scmp.lt.s32.totalorder %s14, 2
      // Predicated region
      $region29: #{sequential_forward.1} parent=5 // pred_check
        %p178 = pneg %p177
      $region30: #{sequential_forward.1} parent=5 // pred_check_branch
        %180 = sbr.rel (%p178) target = $region32
      $region31: #{sequential_forward.1} parent=5 // pred_region
        // Predicated region
        $region33: #{sequential_forward.1} parent=31 // pred_check
          %p181 = pneg %p34
        $region34: #{sequential_forward.1} parent=31 // pred_check_branch
          %183 = sbr.rel (%p181) target = $region36
        $region35: #{sequential_forward.1} parent=31 // pred_region
          %p184 = scmp.lt.s32.totalorder %s14, 1
          %s185 = scalar_select %p184, %s14, 1
          %s186 = smul.addr %s185, 18
          %s187 = smul.addr %s186, 4
          %s188 = scalar_lea.vmem %s0, %s187
        $region36: #{sequential_forward.1} parent=31 // pred_fallthru
          _
      $region32: #{sequential_forward.1} parent=5 // pred_fallthru
        _
      %p189 = scmp.le.s32.totalorder 1, %s14
      %p190 = scmp.lt.s32.totalorder %s14, 3
      %p191 = pnand %p189, %p190
      %p192 = pneg %p191
      // Predicated region
      $region37: #{sequential_forward.1} parent=5 // pred_check
        _
      $region38: #{sequential_forward.1} parent=5 // pred_check_branch
        %194 = sbr.rel (%p191) target = $region40
      $region39: #{sequential_forward.1} parent=5 // pred_region
        %s195 = ssub.s32 %s14, 1
        %p196 = scmp.lt.s32.totalorder %s19, 1
        %s197 = scalar_select %p196, %s19, 1
        %s198 = smul.addr %s197, 18
        %s199 = smul.addr %s198, 4
        %s200 = scalar_lea.vmem %s0, %s199
        %p201 = pneg %p40
        %p202 = pneg %p37
        %p203 = pneg %p61
        %p204 = pneg %p58
        %p205 = pneg %p82
        %p206 = pneg %p79
        %p207 = pneg %p103
        %p208 = pneg %p100
        %p209 = pneg %p124
        %p210 = pneg %p121
        %p211 = pneg %p150
        %p212 = pneg %p147
        %s213 = sand.u32 %s137, 1
        %s214 = scalar_lea.sflag [#allocation3], %s213
        %s215 = sand.u32 %s137, 1
        %s216 = smul.addr %s215, 64
        %s217 = scalar_lea.vmem [#allocation2], %s216
        %p218 = scmp.lt.s32.totalorder %s19, 1
        %s219 = scalar_select %p218, %s19, 1
        %s220 = smul.addr %s219, 18
        %s221 = smul.addr %s220, 4
        %s222 = scalar_lea.vmem %s0, %s221
        %v224 = vld [vmem:[%s222] sm:$0xf]
        %v225 = vld [vmem:[%s222 + $0x4] sm:$0xf]
        %v226 = vld [vmem:[%s222 + $0x8] sm:$0xf]
        %v227 = vld [vmem:[%s222 + $0xc] sm:$0xf]
        %v228 = vld [vmem:[%s222 + $0x10] sm:$0xf]
        %v229 = vld [vmem:[%s222 + $0x14] sm:$0xf]
        %v230 = vld [vmem:[%s222 + $0x18] sm:$0xf]
        %v231 = vld [vmem:[%s222 + $0x1c] sm:$0xf]
        %v232 = vld [vmem:[%s222 + $0x20] sm:$0xf]
        %v233 = vld [vmem:[%s222 + $0x24] sm:$0xf]
        %v234 = vld [vmem:[%s222 + $0x28] sm:$0xf]
        %v235 = vld [vmem:[%s222 + $0x2c] sm:$0xf]
        %v236 = vld [vmem:[%s222 + $0x30] sm:$0xf]
        %v237 = vld [vmem:[%s222 + $0x34] sm:$0xf]
        %v238 = vld [vmem:[%s222 + $0x38] sm:$0xf]
        %v239 = vld [vmem:[%s222 + $0x3c] sm:$0xf]
        %v240 = vld [vmem:[%s222 + $0x40] sm:$0xf]
        %v241 = vld [vmem:[%s222 + $0x44] sm:$0xf]
        %v242 = vld [vmem:[%s1] sm:$0xf]
        %v243 = vld [vmem:[%s1 + $0x4] sm:$0xf]
        %v244 = vld [vmem:[%s1 + $0x8] sm:$0xf]
        %v245 = vld [vmem:[%s1 + $0xc] sm:$0x1]
        %v246 = vld [vmem:[%s2] sm:$0x1]
        %v248 = vlaneseq
        %v249 = vshrl.u32 %v248, 7
        %v250 = vsub.s32 0, %v249
        %v251 = vrot.slane %v246, %v250
        %v271 = vunpack.c.l.b16 %v224
        %v272 = vunpack.c.l.b16 %v225
        %v273 = vunpack.c.l.b16 %v226
        %v274 = vunpack.c.l.b16 %v227
        %v275 = vunpack.c.l.b16 %v228
        %v276 = vunpack.c.l.b16 %v229
        %v277 = vunpack.c.l.b16 %v230
        %v278 = vunpack.c.l.b16 %v231
        %v279 = vunpack.c.l.b16 %v232
        %v280 = vunpack.c.l.b16 %v233
        %v281 = vunpack.c.l.b16 %v234
        %v282 = vunpack.c.l.b16 %v235
        %v283 = vunpack.c.l.b16 %v236
        %v284 = vunpack.c.l.b16 %v237
        %v285 = vunpack.c.l.b16 %v238
        %v286 = vunpack.c.l.b16 %v239
        %v287 = vunpack.c.l.b16 %v240
        %v288 = vunpack.c.l.b16 %v241
        %v289 = vpack.c.b16 %v272, %v271
        %v290 = vpack.c.b16 %v274, %v273
        %v291 = vpack.c.b16 %v276, %v275
        %v292 = vpack.c.b16 %v278, %v277
        %v293 = vpack.c.b16 %v280, %v279
        %v294 = vpack.c.b16 %v282, %v281
        %v295 = vpack.c.b16 %v284, %v283
        %v296 = vpack.c.b16 %v286, %v285
        %v297 = vpack.c.b16 %v288, %v287
        %v302 = vunpack.c.l.b16 %v242
        %v303 = vunpack.c.l.b16 %v243
        %v304 = vunpack.c.l.b16 %v244
        %v305 = vunpack.c.l.b16 %v245
        %v306 = vpack.c.b16 %v303, %v302
        %v307 = vpack.c.b16 %v305, %v304
        %vm309 = vcmask 203776
        %v311 = vsel %vm309, %v289, 0
        %v314 = vsel %vm309, %v290, 0
        %v317 = vsel %vm309, %v291, 0
        %v320 = vsel %vm309, %v292, 0
        %v323 = vsel %vm309, %v293, 0
        %v326 = vsel %vm309, %v294, 0
        %v329 = vsel %vm309, %v295, 0
        %v332 = vsel %vm309, %v296, 0
        %v335 = vsel %vm309, %v297, 0
        %vm337 = vcmask 1043456
        %vm338 = vcmask 1044480
        %v339 = vsel %vm337, 4294967295, 65535
        %v340 = vsel %vm338, %v339, 0
        %v342 = vand.u32 %v307, %v340
        %344 = vmatprep.subr.bf16.mxu0 0
        %345 = vmatpush1.bf16.msra.mxu0 0
        %346 = vmatprep.subr.bf16.mxu0 0
        %347 = vmatpush1.bf16.msra.mxu0 0
        %348 = vmatprep.subr.bf16.mxu0 0
        %349 = vmatpush1.bf16.msra.mxu0 0
        %350 = vmatprep.subr.bf16.mxu0 0
        %351 = vmatpush1.bf16.msra.mxu0 0
        %352 = vmatprep.subr.bf16.mxu0 0
        %353 = vmatpush1.bf16.msra.mxu0 0
        %354 = vmatprep.subr.bf16.mxu0 0
        %355 = vmatpush1.bf16.msra.mxu0 0
        %356 = vmatprep.subr.bf16.mxu0 0
        %357 = vmatpush1.bf16.msra.mxu0 %v342
        %358 = vmatprep.subr.bf16.mxu0 0
        %359 = vmatpush1.bf16.msra.mxu0 %v306
        %360 = vmatprep.subr.bf16.mxu0 0
        %361 = vmatpush2.bf16.msra.mxu0 0
        %362 = vmatprep.subr.bf16.mxu0 0
        %363 = vmatpush2.bf16.msra.mxu0 0
        %364 = vmatprep.subr.bf16.mxu0 0
        %365 = vmatpush2.bf16.msra.mxu0 0
        %366 = vmatprep.subr.bf16.mxu0 0
        %367 = vmatpush2.bf16.msra.mxu0 0
        %368 = vmatprep.subr.bf16.mxu0 0
        %369 = vmatpush2.bf16.msra.mxu0 0
        %370 = vmatprep.subr.bf16.mxu0 0
        %371 = vmatpush2.bf16.msra.mxu0 0
        %372 = vmatprep.subr.bf16.mxu0 0
        %373 = vmatpush2.bf16.msra.mxu0 0
        %374 = vmatprep.subr.bf16.mxu0 0
        %375 = vmatpush2.bf16.msra.mxu0 0
        %376 = vmatprep.mubr.bf16.mxu0 0
        %377 = vmatmul.mubr.bf16.gmra.mxu0 %v311
        %v378 = vpop.f32.mrf.mxu0
        %v379 = vadd.f32 %v251, %v378
        %v380 = vpop.f32.mrf.mxu0
        %v381 = vpop.f32.mrf.mxu0
        %v382 = vadd.f32 %v251, %v381
        %v383 = vpop.f32.mrf.mxu0
        %384 = vmatprep.mubr.bf16.mxu0 0
        %385 = vmatmul.mubr.bf16.gmra.mxu0 %v314
        %v386 = vpop.f32.mrf.mxu0
        %v387 = vadd.f32 %v251, %v386
        %v388 = vpop.f32.mrf.mxu0
        %v389 = vpop.f32.mrf.mxu0
        %v390 = vadd.f32 %v251, %v389
        %v391 = vpop.f32.mrf.mxu0
        %392 = vmatprep.mubr.bf16.mxu0 0
        %393 = vmatmul.mubr.bf16.gmra.mxu0 %v317
        %v394 = vpop.f32.mrf.mxu0
        %v395 = vadd.f32 %v251, %v394
        %v396 = vpop.f32.mrf.mxu0
        %v397 = vpop.f32.mrf.mxu0
        %v398 = vadd.f32 %v251, %v397
        %v399 = vpop.f32.mrf.mxu0
        %400 = vmatprep.mubr.bf16.mxu0 0
        %401 = vmatmul.mubr.bf16.gmra.mxu0 %v320
        %v402 = vpop.f32.mrf.mxu0
        %v403 = vadd.f32 %v251, %v402
        %v404 = vpop.f32.mrf.mxu0
        %v405 = vpop.f32.mrf.mxu0
        %v406 = vadd.f32 %v251, %v405
        %v407 = vpop.f32.mrf.mxu0
        %408 = vmatprep.mubr.bf16.mxu0 0
        %409 = vmatmul.mubr.bf16.gmra.mxu0 %v323
        %v410 = vpop.f32.mrf.mxu0
        %v411 = vadd.f32 %v251, %v410
        %v412 = vpop.f32.mrf.mxu0
        %v413 = vpop.f32.mrf.mxu0
        %v414 = vadd.f32 %v251, %v413
        %v415 = vpop.f32.mrf.mxu0
        %416 = vmatprep.mubr.bf16.mxu0 0
        %417 = vmatmul.mubr.bf16.gmra.mxu0 %v326
        %v418 = vpop.f32.mrf.mxu0
        %v419 = vadd.f32 %v251, %v418
        %v420 = vpop.f32.mrf.mxu0
        %v421 = vpop.f32.mrf.mxu0
        %v422 = vadd.f32 %v251, %v421
        %v423 = vpop.f32.mrf.mxu0
        %424 = vmatprep.mubr.bf16.mxu0 0
        %425 = vmatmul.mubr.bf16.gmra.mxu0 %v329
        %v426 = vpop.f32.mrf.mxu0
        %v427 = vadd.f32 %v251, %v426
        %v428 = vpop.f32.mrf.mxu0
        %v429 = vpop.f32.mrf.mxu0
        %v430 = vadd.f32 %v251, %v429
        %v431 = vpop.f32.mrf.mxu0
        %432 = vmatprep.mubr.bf16.mxu0 0
        %433 = vmatmul.mubr.bf16.gmra.mxu0 %v332
        %v434 = vpop.f32.mrf.mxu0
        %v435 = vadd.f32 %v251, %v434
        %v436 = vpop.f32.mrf.mxu0
        %v437 = vpop.f32.mrf.mxu0
        %v438 = vadd.f32 %v251, %v437
        %v439 = vpop.f32.mrf.mxu0
        %440 = vmatprep.mubr.bf16.mxu0 0
        %441 = vmatmul.mubr.bf16.gmra.mxu0 %v335
        %v442 = vpop.f32.mrf.mxu0
        %v443 = vadd.f32 %v251, %v442
        %v444 = vpop.f32.mrf.mxu0
        %v445 = vpop.f32.mrf.mxu0
        %v446 = vadd.f32 %v251, %v445
        %v447 = vpop.f32.mrf.mxu0
        %448 = vdwg.mxu0
        %v449 = vmax.f32 %v379, 0.0
        %v450 = vmax.f32 %v382, 0.0
        %v451 = vmax.f32 %v387, 0.0
        %v452 = vmax.f32 %v390, 0.0
        %v453 = vmax.f32 %v395, 0.0
        %v454 = vmax.f32 %v398, 0.0
        %v455 = vmax.f32 %v403, 0.0
        %v456 = vmax.f32 %v406, 0.0
        %v457 = vmax.f32 %v411, 0.0
        %v458 = vmax.f32 %v414, 0.0
        %v459 = vmax.f32 %v419, 0.0
        %v460 = vmax.f32 %v422, 0.0
        %v461 = vmax.f32 %v427, 0.0
        %v462 = vmax.f32 %v430, 0.0
        %v463 = vmax.f32 %v435, 0.0
        %v464 = vmax.f32 %v438, 0.0
        %v465 = vmax.f32 %v443, 0.0
        %v466 = vmax.f32 %v446, 0.0
        %v467 = vpack.c.bf16 %v450, %v449
        %v468 = vpack.c.bf16 %v452, %v451
        %v469 = vpack.c.bf16 %v454, %v453
        %v470 = vpack.c.bf16 %v456, %v455
        %v471 = vpack.c.bf16 %v458, %v457
        %v472 = vpack.c.bf16 %v460, %v459
        %v473 = vpack.c.bf16 %v462, %v461
        %v474 = vpack.c.bf16 %v464, %v463
        %v475 = vpack.c.bf16 %v466, %v465
        %vm476 = vsmask.f32 7424
        %v478 = vshrl.u32 %v467, 16
        %v480 = vshll.u32 %v467, 16
        %v482 = vrot.slane %v480, 1
        %v483 = vor.u32 %v478, %v482
        %v485 = vshll.u32 %v468, 16
        %v487 = vrot.slane %v485, 1
        %v488 = vsel %vm476, %v483, %v487
        %v489 = vshrl.u32 %v468, 16
        %v491 = vor.u32 %v489, %v487
        %v493 = vshll.u32 %v469, 16
        %v495 = vrot.slane %v493, 1
        %v496 = vsel %vm476, %v491, %v495
        %v497 = vshrl.u32 %v469, 16
        %v499 = vor.u32 %v497, %v495
        %v501 = vshll.u32 %v470, 16
        %v503 = vrot.slane %v501, 1
        %v504 = vsel %vm476, %v499, %v503
        %v505 = vshrl.u32 %v470, 16
        %v507 = vor.u32 %v505, %v503
        %v509 = vshll.u32 %v471, 16
        %v511 = vrot.slane %v509, 1
        %v512 = vsel %vm476, %v507, %v511
        %v513 = vshrl.u32 %v471, 16
        %v515 = vor.u32 %v513, %v511
        %v517 = vshll.u32 %v472, 16
        %v519 = vrot.slane %v517, 1
        %v520 = vsel %vm476, %v515, %v519
        %v521 = vshrl.u32 %v472, 16
        %v523 = vor.u32 %v521, %v519
        %524 = vrot.lane.b32.xlu0 %v488, 32
        %v525 = vpop.permute.xlu0 %524
        %526 = vrot.lane.b32.xlu0 %v496, 32
        %v527 = vpop.permute.xlu0 %526
        %528 = vrot.lane.b32.xlu0 %v504, 32
        %v529 = vpop.permute.xlu0 %528
        %530 = vrot.lane.b32.xlu0 %v512, 32
        %v531 = vpop.permute.xlu0 %530
        %532 = vrot.lane.b32.xlu0 %v520, 32
        %v533 = vpop.permute.xlu0 %532
        %534 = vrot.lane.b32.xlu0 %v523, 32
        %v535 = vpop.permute.xlu0 %534
        %vm542 = vcmask 1046528
        %v543 = vrot.slane %v467, 1
        %v544 = vrot.slane %v468, 1
        %v545 = vsel %vm542, %v543, %v544
        %v546 = vrot.slane %v469, 1
        %v547 = vsel %vm542, %v544, %v546
        %v548 = vrot.slane %v470, 1
        %v549 = vsel %vm542, %v546, %v548
        %v550 = vrot.slane %v471, 1
        %v551 = vsel %vm542, %v548, %v550
        %v552 = vrot.slane %v472, 1
        %v553 = vsel %vm542, %v550, %v552
        %554 = vrot.lane.b32.xlu0 %v545, 64
        %v555 = vpop.permute.xlu0 %554
        %556 = vrot.lane.b32.xlu0 %v547, 64
        %v557 = vpop.permute.xlu0 %556
        %558 = vrot.lane.b32.xlu0 %v549, 64
        %v559 = vpop.permute.xlu0 %558
        %560 = vrot.lane.b32.xlu0 %v551, 64
        %v561 = vpop.permute.xlu0 %560
        %562 = vrot.lane.b32.xlu0 %v553, 64
        %v563 = vpop.permute.xlu0 %562
        %564 = vrot.lane.b32.xlu0 %v552, 64
        %v565 = vpop.permute.xlu0 %564
        %vm566 = vsmask.f32 6400
        %v567 = vrot.slane %v478, 1
        %v568 = vrot.slane %v480, 2
        %v569 = vor.u32 %v567, %v568
        %v570 = vrot.slane %v489, 1
        %v571 = vrot.slane %v485, 2
        %v572 = vor.u32 %v570, %v571
        %v573 = vsel %vm566, %v569, %v572
        %v574 = vrot.slane %v497, 1
        %v575 = vrot.slane %v493, 2
        %v576 = vor.u32 %v574, %v575
        %v577 = vsel %vm566, %v572, %v576
        %v578 = vrot.slane %v505, 1
        %v579 = vrot.slane %v501, 2
        %v580 = vor.u32 %v578, %v579
        %v581 = vsel %vm566, %v576, %v580
        %v582 = vrot.slane %v513, 1
        %v583 = vrot.slane %v509, 2
        %v584 = vor.u32 %v582, %v583
        %v585 = vsel %vm566, %v580, %v584
        %v586 = vrot.slane %v521, 1
        %v587 = vrot.slane %v517, 2
        %v588 = vor.u32 %v586, %v587
        %v589 = vsel %vm566, %v584, %v588
        %590 = vrot.lane.b32.xlu0 %v573, 96
        %v591 = vpop.permute.xlu0 %590
        %592 = vrot.lane.b32.xlu0 %v577, 96
        %v593 = vpop.permute.xlu0 %592
        %594 = vrot.lane.b32.xlu0 %v581, 96
        %v595 = vpop.permute.xlu0 %594
        %596 = vrot.lane.b32.xlu0 %v585, 96
        %v597 = vpop.permute.xlu0 %596
        %598 = vrot.lane.b32.xlu0 %v589, 96
        %v599 = vpop.permute.xlu0 %598
        %600 = vrot.lane.b32.xlu0 %v588, 96
        %v601 = vpop.permute.xlu0 %600
        %vm602 = vcmask 1045504
        %v603 = vrot.slane %v467, 2
        %v604 = vrot.slane %v468, 2
        %v605 = vsel %vm602, %v603, %v604
        %v606 = vrot.slane %v469, 2
        %v607 = vsel %vm602, %v604, %v606
        %v608 = vrot.slane %v470, 2
        %v609 = vsel %vm602, %v606, %v608
        %v610 = vrot.slane %v471, 2
        %v611 = vsel %vm602, %v608, %v610
        %v612 = vrot.slane %v472, 2
        %v613 = vsel %vm602, %v610, %v612
        %vm615 = vcmask 1041408
        %v616 = vrot.slane %v467, 6
        %v617 = vrot.slane %v468, 6
        %v618 = vsel %vm615, %v616, %v617
        %v619 = vrot.slane %v469, 6
        %v620 = vsel %vm615, %v617, %v619
        %v621 = vrot.slane %v470, 6
        %v622 = vsel %vm615, %v619, %v621
        %v623 = vrot.slane %v471, 6
        %v624 = vsel %vm615, %v621, %v623
        %v625 = vrot.slane %v472, 6
        %v626 = vsel %vm615, %v623, %v625
        %v627 = vrot.slane %v473, 6
        %v628 = vsel %vm615, %v625, %v627
        %629 = vrot.lane.b32.xlu0 %v618, 32
        %v630 = vpop.permute.xlu0 %629
        %631 = vrot.lane.b32.xlu0 %v620, 32
        %v632 = vpop.permute.xlu0 %631
        %633 = vrot.lane.b32.xlu0 %v622, 32
        %v634 = vpop.permute.xlu0 %633
        %635 = vrot.lane.b32.xlu0 %v624, 32
        %v636 = vpop.permute.xlu0 %635
        %637 = vrot.lane.b32.xlu0 %v626, 32
        %v638 = vpop.permute.xlu0 %637
        %639 = vrot.lane.b32.xlu0 %v628, 32
        %v640 = vpop.permute.xlu0 %639
        %vm641 = vsmask.f32 1280
        %v642 = vrot.slane %v478, 6
        %v643 = vrot.slane %v480, 7
        %v644 = vor.u32 %v642, %v643
        %v645 = vrot.slane %v489, 6
        %v646 = vrot.slane %v485, 7
        %v647 = vor.u32 %v645, %v646
        %v648 = vsel %vm641, %v644, %v647
        %v649 = vrot.slane %v497, 6
        %v650 = vrot.slane %v493, 7
        %v651 = vor.u32 %v649, %v650
        %v652 = vsel %vm641, %v647, %v651
        %v653 = vrot.slane %v505, 6
        %v654 = vrot.slane %v501, 7
        %v655 = vor.u32 %v653, %v654
        %v656 = vsel %vm641, %v651, %v655
        %v657 = vrot.slane %v513, 6
        %v658 = vrot.slane %v509, 7
        %v659 = vor.u32 %v657, %v658
        %v660 = vsel %vm641, %v655, %v659
        %v661 = vrot.slane %v521, 6
        %v662 = vrot.slane %v517, 7
        %v663 = vor.u32 %v661, %v662
        %v664 = vsel %vm641, %v659, %v663
        %v666 = vshrl.u32 %v473, 16
        %v668 = vrot.slane %v666, 6
        %v669 = vshll.u32 %v473, 16
        %v671 = vrot.slane %v669, 7
        %v672 = vor.u32 %v668, %v671
        %v673 = vsel %vm641, %v663, %v672
        %674 = vrot.lane.b32.xlu0 %v648, 64
        %v675 = vpop.permute.xlu0 %674
        %676 = vrot.lane.b32.xlu0 %v652, 64
        %v677 = vpop.permute.xlu0 %676
        %678 = vrot.lane.b32.xlu0 %v656, 64
        %v679 = vpop.permute.xlu0 %678
        %680 = vrot.lane.b32.xlu0 %v660, 64
        %v681 = vpop.permute.xlu0 %680
        %682 = vrot.lane.b32.xlu0 %v664, 64
        %v683 = vpop.permute.xlu0 %682
        %684 = vrot.lane.b32.xlu0 %v673, 64
        %v685 = vpop.permute.xlu0 %684
        %vm686 = vcmask 1040384
        %v687 = vrot.slane %v467, 7
        %v688 = vrot.slane %v468, 7
        %v689 = vsel %vm686, %v687, %v688
        %v690 = vrot.slane %v469, 7
        %v691 = vsel %vm686, %v688, %v690
        %v692 = vrot.slane %v470, 7
        %v693 = vsel %vm686, %v690, %v692
        %v694 = vrot.slane %v471, 7
        %v695 = vsel %vm686, %v692, %v694
        %v696 = vrot.slane %v472, 7
        %v697 = vsel %vm686, %v694, %v696
        %v698 = vrot.slane %v473, 7
        %v699 = vsel %vm686, %v696, %v698
        %700 = vrot.lane.b32.xlu0 %v689, 96
        %v701 = vpop.permute.xlu0 %700
        %702 = vrot.lane.b32.xlu0 %v691, 96
        %v703 = vpop.permute.xlu0 %702
        %704 = vrot.lane.b32.xlu0 %v693, 96
        %v705 = vpop.permute.xlu0 %704
        %706 = vrot.lane.b32.xlu0 %v695, 96
        %v707 = vpop.permute.xlu0 %706
        %708 = vrot.lane.b32.xlu0 %v697, 96
        %v709 = vpop.permute.xlu0 %708
        %710 = vrot.lane.b32.xlu0 %v699, 96
        %v711 = vpop.permute.xlu0 %710
        %vm712 = vsmask.f32 256
        %v713 = vrot.slane %v478, 7
        %v714 = vrot.slane %v489, 7
        %v715 = vor.u32 %v714, %v485
        %v716 = vsel %vm712, %v713, %v715
        %v717 = vrot.slane %v497, 7
        %v718 = vor.u32 %v717, %v493
        %v719 = vsel %vm712, %v714, %v718
        %v720 = vrot.slane %v505, 7
        %v721 = vor.u32 %v720, %v501
        %v722 = vsel %vm712, %v717, %v721
        %v723 = vrot.slane %v513, 7
        %v724 = vor.u32 %v723, %v509
        %v725 = vsel %vm712, %v720, %v724
        %v726 = vrot.slane %v521, 7
        %v727 = vor.u32 %v726, %v517
        %v728 = vsel %vm712, %v723, %v727
        %v729 = vrot.slane %v666, 7
        %v730 = vor.u32 %v729, %v669
        %v731 = vsel %vm712, %v726, %v730
        %732 = vrot.lane.b32.xlu0 %v468, 32
        %v733 = vpop.permute.xlu0 %732
        %734 = vrot.lane.b32.xlu0 %v469, 32
        %v735 = vpop.permute.xlu0 %734
        %736 = vrot.lane.b32.xlu0 %v470, 32
        %v737 = vpop.permute.xlu0 %736
        %738 = vrot.lane.b32.xlu0 %v471, 32
        %v739 = vpop.permute.xlu0 %738
        %740 = vrot.lane.b32.xlu0 %v472, 32
        %v741 = vpop.permute.xlu0 %740
        %742 = vrot.lane.b32.xlu0 %v473, 32
        %v743 = vpop.permute.xlu0 %742
        %vm745 = vcmask 1043456
        %v746 = vrot.slane %v468, 4
        %v747 = vrot.slane %v469, 4
        %v748 = vsel %vm745, %v746, %v747
        %v749 = vrot.slane %v470, 4
        %v750 = vsel %vm745, %v747, %v749
        %v751 = vrot.slane %v471, 4
        %v752 = vsel %vm745, %v749, %v751
        %v753 = vrot.slane %v472, 4
        %v754 = vsel %vm745, %v751, %v753
        %v755 = vrot.slane %v473, 4
        %v756 = vsel %vm745, %v753, %v755
        %v757 = vrot.slane %v474, 4
        %v758 = vsel %vm745, %v755, %v757
        %759 = vrot.lane.b32.xlu0 %v748, 64
        %v760 = vpop.permute.xlu0 %759
        %761 = vrot.lane.b32.xlu0 %v750, 64
        %v762 = vpop.permute.xlu0 %761
        %763 = vrot.lane.b32.xlu0 %v752, 64
        %v764 = vpop.permute.xlu0 %763
        %765 = vrot.lane.b32.xlu0 %v754, 64
        %v766 = vpop.permute.xlu0 %765
        %767 = vrot.lane.b32.xlu0 %v756, 64
        %v768 = vpop.permute.xlu0 %767
        %769 = vrot.lane.b32.xlu0 %v758, 64
        %v770 = vpop.permute.xlu0 %769
        %vm771 = vsmask.f32 3328
        %v772 = vrot.slane %v489, 4
        %v773 = vrot.slane %v485, 5
        %v774 = vor.u32 %v772, %v773
        %v775 = vrot.slane %v497, 4
        %v776 = vrot.slane %v493, 5
        %v777 = vor.u32 %v775, %v776
        %v778 = vsel %vm771, %v774, %v777
        %v779 = vrot.slane %v505, 4
        %v780 = vrot.slane %v501, 5
        %v781 = vor.u32 %v779, %v780
        %v782 = vsel %vm771, %v777, %v781
        %v783 = vrot.slane %v513, 4
        %v784 = vrot.slane %v509, 5
        %v785 = vor.u32 %v783, %v784
        %v786 = vsel %vm771, %v781, %v785
        %v787 = vrot.slane %v521, 4
        %v788 = vrot.slane %v517, 5
        %v789 = vor.u32 %v787, %v788
        %v790 = vsel %vm771, %v785, %v789
        %v791 = vrot.slane %v666, 4
        %v792 = vrot.slane %v669, 5
        %v793 = vor.u32 %v791, %v792
        %v794 = vsel %vm771, %v789, %v793
        %v796 = vshrl.u32 %v474, 16
        %v798 = vrot.slane %v796, 4
        %v799 = vshll.u32 %v474, 16
        %v801 = vrot.slane %v799, 5
        %v802 = vor.u32 %v798, %v801
        %v803 = vsel %vm771, %v793, %v802
        %804 = vrot.lane.b32.xlu0 %v778, 96
        %v805 = vpop.permute.xlu0 %804
        %806 = vrot.lane.b32.xlu0 %v782, 96
        %v807 = vpop.permute.xlu0 %806
        %808 = vrot.lane.b32.xlu0 %v786, 96
        %v809 = vpop.permute.xlu0 %808
        %810 = vrot.lane.b32.xlu0 %v790, 96
        %v811 = vpop.permute.xlu0 %810
        %812 = vrot.lane.b32.xlu0 %v794, 96
        %v813 = vpop.permute.xlu0 %812
        %814 = vrot.lane.b32.xlu0 %v803, 96
        %v815 = vpop.permute.xlu0 %814
        %vm816 = vcmask 1042432
        %v817 = vrot.slane %v468, 5
        %v818 = vrot.slane %v469, 5
        %v819 = vsel %vm816, %v817, %v818
        %v820 = vrot.slane %v470, 5
        %v821 = vsel %vm816, %v818, %v820
        %v822 = vrot.slane %v471, 5
        %v823 = vsel %vm816, %v820, %v822
        %v824 = vrot.slane %v472, 5
        %v825 = vsel %vm816, %v822, %v824
        %v826 = vrot.slane %v473, 5
        %v827 = vsel %vm816, %v824, %v826
        %v828 = vrot.slane %v474, 5
        %v829 = vsel %vm816, %v826, %v828
        %vm830 = vsmask.f32 2304
        %v831 = vrot.slane %v489, 5
        %v832 = vrot.slane %v485, 6
        %v833 = vor.u32 %v831, %v832
        %v834 = vrot.slane %v497, 5
        %v835 = vrot.slane %v493, 6
        %v836 = vor.u32 %v834, %v835
        %v837 = vsel %vm830, %v833, %v836
        %v838 = vrot.slane %v505, 5
        %v839 = vrot.slane %v501, 6
        %v840 = vor.u32 %v838, %v839
        %v841 = vsel %vm830, %v836, %v840
        %v842 = vrot.slane %v513, 5
        %v843 = vrot.slane %v509, 6
        %v844 = vor.u32 %v842, %v843
        %v845 = vsel %vm830, %v840, %v844
        %v846 = vrot.slane %v521, 5
        %v847 = vrot.slane %v517, 6
        %v848 = vor.u32 %v846, %v847
        %v849 = vsel %vm830, %v844, %v848
        %v850 = vrot.slane %v666, 5
        %v851 = vrot.slane %v669, 6
        %v852 = vor.u32 %v850, %v851
        %v853 = vsel %vm830, %v848, %v852
        %v854 = vrot.slane %v796, 5
        %v855 = vrot.slane %v799, 6
        %v856 = vor.u32 %v854, %v855
        %v857 = vsel %vm830, %v852, %v856
        %858 = vrot.lane.b32.xlu0 %v837, 32
        %v859 = vpop.permute.xlu0 %858
        %860 = vrot.lane.b32.xlu0 %v841, 32
        %v861 = vpop.permute.xlu0 %860
        %862 = vrot.lane.b32.xlu0 %v845, 32
        %v863 = vpop.permute.xlu0 %862
        %864 = vrot.lane.b32.xlu0 %v849, 32
        %v865 = vpop.permute.xlu0 %864
        %866 = vrot.lane.b32.xlu0 %v853, 32
        %v867 = vpop.permute.xlu0 %866
        %868 = vrot.lane.b32.xlu0 %v857, 32
        %v869 = vpop.permute.xlu0 %868
        %v870 = vrot.slane %v474, 6
        %v871 = vsel %vm615, %v627, %v870
        %872 = vrot.lane.b32.xlu0 %v620, 64
        %v873 = vpop.permute.xlu0 %872
        %874 = vrot.lane.b32.xlu0 %v622, 64
        %v875 = vpop.permute.xlu0 %874
        %876 = vrot.lane.b32.xlu0 %v624, 64
        %v877 = vpop.permute.xlu0 %876
        %878 = vrot.lane.b32.xlu0 %v626, 64
        %v879 = vpop.permute.xlu0 %878
        %880 = vrot.lane.b32.xlu0 %v628, 64
        %v881 = vpop.permute.xlu0 %880
        %882 = vrot.lane.b32.xlu0 %v871, 64
        %v883 = vpop.permute.xlu0 %882
        %v884 = vrot.slane %v473, 2
        %v885 = vsel %vm602, %v612, %v884
        %v886 = vrot.slane %v474, 2
        %v887 = vsel %vm602, %v884, %v886
        %888 = vrot.lane.b32.xlu0 %v609, 96
        %v889 = vpop.permute.xlu0 %888
        %890 = vrot.lane.b32.xlu0 %v611, 96
        %v891 = vpop.permute.xlu0 %890
        %892 = vrot.lane.b32.xlu0 %v613, 96
        %v893 = vpop.permute.xlu0 %892
        %894 = vrot.lane.b32.xlu0 %v885, 96
        %v895 = vpop.permute.xlu0 %894
        %896 = vrot.lane.b32.xlu0 %v887, 96
        %v897 = vpop.permute.xlu0 %896
        %898 = vrot.lane.b32.xlu0 %v886, 96
        %v899 = vpop.permute.xlu0 %898
        %vm900 = vcmask 261120
        %v902 = vsel %vm900, %v467, %v525
        %v904 = vsel %vm900, %v468, %v527
        %v906 = vsel %vm900, %v469, %v529
        %v908 = vsel %vm900, %v470, %v531
        %v910 = vsel %vm900, %v471, %v533
        %v912 = vsel %vm900, %v472, %v535
        %vm913 = vcmask 523264
        %v915 = vsel %vm913, %v902, %v555
        %v917 = vsel %vm913, %v904, %v557
        %v919 = vsel %vm913, %v906, %v559
        %v921 = vsel %vm913, %v908, %v561
        %v923 = vsel %vm913, %v910, %v563
        %v925 = vsel %vm913, %v912, %v565
        %vm926 = vcmask 785408
        %v928 = vsel %vm926, %v915, %v591
        %v931 = vsel %vm926, %v917, %v593
        %v934 = vsel %vm926, %v919, %v595
        %v937 = vsel %vm926, %v921, %v597
        %v940 = vsel %vm926, %v923, %v599
        %v943 = vsel %vm926, %v925, %v601
        %v947 = vsel %vm900, %v605, %v630
        %v950 = vsel %vm900, %v607, %v632
        %v953 = vsel %vm900, %v609, %v634
        %v956 = vsel %vm900, %v611, %v636
        %v959 = vsel %vm900, %v613, %v638
        %v962 = vsel %vm900, %v612, %v640
        %v964 = vsel %vm913, %v947, %v675
        %v966 = vsel %vm913, %v950, %v677
        %v968 = vsel %vm913, %v953, %v679
        %v970 = vsel %vm913, %v956, %v681
        %v972 = vsel %vm913, %v959, %v683
        %v974 = vsel %vm913, %v962, %v685
        %v976 = vsel %vm926, %v964, %v701
        %v979 = vsel %vm926, %v966, %v703
        %v982 = vsel %vm926, %v968, %v705
        %v985 = vsel %vm926, %v970, %v707
        %v988 = vsel %vm926, %v972, %v709
        %v991 = vsel %vm926, %v974, %v711
        %v995 = vsel %vm900, %v716, %v733
        %v998 = vsel %vm900, %v719, %v735
        %v1001 = vsel %vm900, %v722, %v737
        %v1004 = vsel %vm900, %v725, %v739
        %v1007 = vsel %vm900, %v728, %v741
        %v1010 = vsel %vm900, %v731, %v743
        %v1012 = vsel %vm913, %v995, %v760
        %v1014 = vsel %vm913, %v998, %v762
        %v1016 = vsel %vm913, %v1001, %v764
        %v1018 = vsel %vm913, %v1004, %v766
        %v1020 = vsel %vm913, %v1007, %v768
        %v1022 = vsel %vm913, %v1010, %v770
        %v1024 = vsel %vm926, %v1012, %v805
        %v1027 = vsel %vm926, %v1014, %v807
        %v1030 = vsel %vm926, %v1016, %v809
        %v1033 = vsel %vm926, %v1018, %v811
        %v1036 = vsel %vm926, %v1020, %v813
        %v1039 = vsel %vm926, %v1022, %v815
        %v1043 = vsel %vm900, %v819, %v859
        %v1046 = vsel %vm900, %v821, %v861
        %v1049 = vsel %vm900, %v823, %v863
        %v1052 = vsel %vm900, %v825, %v865
        %v1055 = vsel %vm900, %v827, %v867
        %v1058 = vsel %vm900, %v829, %v869
        %v1060 = vsel %vm913, %v1043, %v873
        %v1062 = vsel %vm913, %v1046, %v875
        %v1064 = vsel %vm913, %v1049, %v877
        %v1066 = vsel %vm913, %v1052, %v879
        %v1068 = vsel %vm913, %v1055, %v881
        %v1070 = vsel %vm913, %v1058, %v883
        %v1072 = vsel %vm926, %v1060, %v889
        %v1075 = vsel %vm926, %v1062, %v891
        %v1078 = vsel %vm926, %v1064, %v893
        %v1081 = vsel %vm926, %v1066, %v895
        %v1084 = vsel %vm926, %v1068, %v897
        %v1087 = vsel %vm926, %v1070, %v899
        %v1089 = vrot.slane %v669, 1
        %v1090 = vsel %vm476, %v523, %v1089
        %v1091 = vor.u32 %v666, %v1089
        %v1092 = vrot.slane %v799, 1
        %v1093 = vsel %vm476, %v1091, %v1092
        %v1094 = vor.u32 %v796, %v1092
        %v1096 = vshll.u32 %v475, 16
        %v1098 = vrot.slane %v1096, 1
        %v1099 = vsel %vm476, %v1094, %v1098
        %v1100 = vshrl.u32 %v475, 16
        %1102 = vrot.lane.b32.xlu0 %v1090, 32
        %v1103 = vpop.permute.xlu0 %1102
        %1104 = vrot.lane.b32.xlu0 %v1093, 32
        %v1105 = vpop.permute.xlu0 %1104
        %1106 = vrot.lane.b32.xlu0 %v1099, 32
        %v1107 = vpop.permute.xlu0 %1106
        %1108 = vrot.lane.b32.xlu0 %v1100, 32
        %v1109 = vpop.permute.xlu0 %1108
        %v1111 = vrot.slane %v473, 1
        %v1112 = vsel %vm542, %v552, %v1111
        %v1113 = vrot.slane %v474, 1
        %v1114 = vsel %vm542, %v1111, %v1113
        %v1115 = vrot.slane %v475, 1
        %v1116 = vsel %vm542, %v1113, %v1115
        %1117 = vrot.lane.b32.xlu0 %v1112, 64
        %v1118 = vpop.permute.xlu0 %1117
        %1119 = vrot.lane.b32.xlu0 %v1114, 64
        %v1120 = vpop.permute.xlu0 %1119
        %1121 = vrot.lane.b32.xlu0 %v1116, 64
        %v1122 = vpop.permute.xlu0 %1121
        %1123 = vrot.lane.b32.xlu0 %v1115, 64
        %v1124 = vpop.permute.xlu0 %1123
        %v1125 = vrot.slane %v666, 1
        %v1126 = vrot.slane %v669, 2
        %v1127 = vor.u32 %v1125, %v1126
        %v1128 = vsel %vm566, %v588, %v1127
        %v1129 = vrot.slane %v796, 1
        %v1130 = vrot.slane %v799, 2
        %v1131 = vor.u32 %v1129, %v1130
        %v1132 = vsel %vm566, %v1127, %v1131
        %v1133 = vrot.slane %v1100, 1
        %v1134 = vrot.slane %v1096, 2
        %v1135 = vor.u32 %v1133, %v1134
        %v1136 = vsel %vm566, %v1131, %v1135
        %1137 = vrot.lane.b32.xlu0 %v1128, 96
        %v1138 = vpop.permute.xlu0 %1137
        %1139 = vrot.lane.b32.xlu0 %v1132, 96
        %v1140 = vpop.permute.xlu0 %1139
        %1141 = vrot.lane.b32.xlu0 %v1136, 96
        %v1142 = vpop.permute.xlu0 %1141
        %1143 = vrot.lane.b32.xlu0 %v1133, 96
        %v1144 = vpop.permute.xlu0 %1143
        %v1145 = vrot.slane %v1100, 5
        %v1146 = vrot.slane %v1096, 6
        %v1147 = vor.u32 %v1145, %v1146
        %v1148 = vsel %vm830, %v856, %v1147
        %v1149 = vrot.slane %v475, 6
        %v1150 = vsel %vm615, %v870, %v1149
        %1151 = vrot.lane.b32.xlu0 %v621, 32
        %v1152 = vpop.permute.xlu0 %1151
        %1153 = vrot.lane.b32.xlu0 %v871, 32
        %v1154 = vpop.permute.xlu0 %1153
        %1155 = vrot.lane.b32.xlu0 %v1150, 32
        %v1156 = vpop.permute.xlu0 %1155
        %1157 = vrot.lane.b32.xlu0 %v1149, 32
        %v1158 = vpop.permute.xlu0 %1157
        %v1159 = vrot.slane %v796, 6
        %v1160 = vrot.slane %v799, 7
        %v1161 = vor.u32 %v1159, %v1160
        %v1162 = vsel %vm641, %v672, %v1161
        %v1163 = vrot.slane %v1100, 6
        %v1164 = vrot.slane %v1096, 7
        %v1165 = vor.u32 %v1163, %v1164
        %v1166 = vsel %vm641, %v1161, %v1165
        %1167 = vrot.lane.b32.xlu0 %v655, 64
        %v1168 = vpop.permute.xlu0 %1167
        %1169 = vrot.lane.b32.xlu0 %v1162, 64
        %v1170 = vpop.permute.xlu0 %1169
        %1171 = vrot.lane.b32.xlu0 %v1166, 64
        %v1172 = vpop.permute.xlu0 %1171
        %1173 = vrot.lane.b32.xlu0 %v1163, 64
        %v1174 = vpop.permute.xlu0 %1173
        %v1175 = vrot.slane %v474, 7
        %v1176 = vsel %vm686, %v698, %v1175
        %v1177 = vrot.slane %v475, 7
        %v1178 = vsel %vm686, %v1175, %v1177
        %1179 = vrot.lane.b32.xlu0 %v692, 96
        %v1180 = vpop.permute.xlu0 %1179
        %1181 = vrot.lane.b32.xlu0 %v1176, 96
        %v1182 = vpop.permute.xlu0 %1181
        %1183 = vrot.lane.b32.xlu0 %v1178, 96
        %v1184 = vpop.permute.xlu0 %1183
        %1185 = vrot.lane.b32.xlu0 %v1177, 96
        %v1186 = vpop.permute.xlu0 %1185
        %v1187 = vrot.slane %v796, 7
        %v1188 = vor.u32 %v1187, %v799
        %v1189 = vsel %vm712, %v729, %v1188
        %v1190 = vrot.slane %v1100, 7
        %v1191 = vor.u32 %v1190, %v1096
        %v1192 = vsel %vm712, %v1187, %v1191
        %v1194 = vsel %vm900, %v472, %v1103
        %v1196 = vsel %vm900, %v473, %v1105
        %v1198 = vsel %vm900, %v474, %v1107
        %v1200 = vsel %vm900, %v475, %v1109
        %v1202 = vsel %vm913, %v1194, %v1118
        %v1204 = vsel %vm913, %v1196, %v1120
        %v1206 = vsel %vm913, %v1198, %v1122
        %v1208 = vsel %vm913, %v1200, %v1124
        %v1210 = vsel %vm926, %v1202, %v1138
        %v1212 = vsel %vm926, %v1204, %v1140
        %v1214 = vsel %vm926, %v1206, %v1142
        %v1216 = vsel %vm926, %v1208, %v1144
        %v1219 = vsel %vm900, %v840, %v1152
        %v1221 = vsel %vm900, %v845, %v636
        %v1223 = vsel %vm900, %v849, %v638
        %v1225 = vsel %vm900, %v853, %v640
        %v1228 = vsel %vm900, %v857, %v1154
        %v1231 = vsel %vm900, %v1148, %v1156
        %v1234 = vsel %vm900, %v1145, %v1158
        %v1236 = vsel %vm913, %v1219, %v1168
        %v1237 = vsel %vm913, %v1221, %v681
        %v1238 = vsel %vm913, %v1223, %v683
        %v1239 = vsel %vm913, %v1225, %v685
        %v1241 = vsel %vm913, %v1228, %v1170
        %v1243 = vsel %vm913, %v1231, %v1172
        %v1245 = vsel %vm913, %v1234, %v1174
        %v1247 = vsel %vm926, %v1236, %v1180
        %v1248 = vsel %vm926, %v1237, %v707
        %v1249 = vsel %vm926, %v1238, %v709
        %v1250 = vsel %vm926, %v1239, %v711
        %v1252 = vsel %vm926, %v1241, %v1182
        %v1254 = vsel %vm926, %v1243, %v1184
        %v1256 = vsel %vm926, %v1245, %v1186
        %vm1257 = vsmask.f32 5376
        %v1258 = vshrl.u32 %v934, 16
        %v1260 = vrot.slane %v1258, 2
        %v1261 = vshll.u32 %v934, 16
        %v1263 = vrot.slane %v1261, 3
        %v1264 = vor.u32 %v1260, %v1263
        %v1265 = vshrl.u32 %v937, 16
        %v1267 = vrot.slane %v1265, 2
        %v1268 = vshll.u32 %v937, 16
        %v1270 = vrot.slane %v1268, 3
        %v1271 = vor.u32 %v1267, %v1270
        %v1272 = vsel %vm1257, %v1264, %v1271
        %v1273 = vshrl.u32 %v1247, 16
        %v1275 = vrot.slane %v1273, 2
        %v1276 = vshll.u32 %v1247, 16
        %v1278 = vrot.slane %v1276, 3
        %v1279 = vor.u32 %v1275, %v1278
        %v1280 = vshrl.u32 %v1248, 16
        %v1282 = vrot.slane %v1280, 2
        %v1283 = vshll.u32 %v1248, 16
        %v1285 = vrot.slane %v1283, 3
        %v1286 = vor.u32 %v1282, %v1285
        %v1287 = vsel %vm1257, %v1279, %v1286
        %v1289 = vshrl.u32 %v721, 16
        %v1291 = vrot.slane %v1289, 2
        %v1292 = vshll.u32 %v721, 16
        %v1294 = vrot.slane %v1292, 3
        %v1295 = vor.u32 %v1291, %v1294
        %v1296 = vshrl.u32 %v725, 16
        %v1298 = vrot.slane %v1296, 2
        %v1299 = vshll.u32 %v725, 16
        %v1301 = vrot.slane %v1299, 3
        %v1302 = vor.u32 %v1298, %v1301
        %v1303 = vsel %vm1257, %v1295, %v1302
        %v1304 = vshrl.u32 %v940, 16
        %v1306 = vrot.slane %v1304, 2
        %v1307 = vshll.u32 %v940, 16
        %v1309 = vrot.slane %v1307, 3
        %v1310 = vor.u32 %v1306, %v1309
        %v1311 = vsel %vm1257, %v1271, %v1310
        %v1312 = vshrl.u32 %v1249, 16
        %v1314 = vrot.slane %v1312, 2
        %v1315 = vshll.u32 %v1249, 16
        %v1317 = vrot.slane %v1315, 3
        %v1318 = vor.u32 %v1314, %v1317
        %v1319 = vsel %vm1257, %v1286, %v1318
        %v1320 = vshrl.u32 %v728, 16
        %v1322 = vrot.slane %v1320, 2
        %v1323 = vshll.u32 %v728, 16
        %v1325 = vrot.slane %v1323, 3
        %v1326 = vor.u32 %v1322, %v1325
        %v1327 = vsel %vm1257, %v1302, %v1326
        %v1328 = vshrl.u32 %v1210, 16
        %v1330 = vrot.slane %v1328, 2
        %v1331 = vshll.u32 %v1210, 16
        %v1333 = vrot.slane %v1331, 3
        %v1334 = vor.u32 %v1330, %v1333
        %v1335 = vsel %vm1257, %v1310, %v1334
        %v1336 = vshrl.u32 %v1250, 16
        %v1338 = vrot.slane %v1336, 2
        %v1339 = vshll.u32 %v1250, 16
        %v1341 = vrot.slane %v1339, 3
        %v1342 = vor.u32 %v1338, %v1341
        %v1343 = vsel %vm1257, %v1318, %v1342
        %v1344 = vshrl.u32 %v731, 16
        %v1346 = vrot.slane %v1344, 2
        %v1347 = vshll.u32 %v731, 16
        %v1349 = vrot.slane %v1347, 3
        %v1350 = vor.u32 %v1346, %v1349
        %v1351 = vsel %vm1257, %v1326, %v1350
        %v1352 = vshrl.u32 %v1212, 16
        %v1354 = vrot.slane %v1352, 2
        %v1355 = vshll.u32 %v1212, 16
        %v1357 = vrot.slane %v1355, 3
        %v1358 = vor.u32 %v1354, %v1357
        %v1359 = vsel %vm1257, %v1334, %v1358
        %v1360 = vshrl.u32 %v1252, 16
        %v1362 = vrot.slane %v1360, 2
        %v1363 = vshll.u32 %v1252, 16
        %v1365 = vrot.slane %v1363, 3
        %v1366 = vor.u32 %v1362, %v1365
        %v1367 = vsel %vm1257, %v1342, %v1366
        %v1369 = vshrl.u32 %v1189, 16
        %v1371 = vrot.slane %v1369, 2
        %v1372 = vshll.u32 %v1189, 16
        %v1374 = vrot.slane %v1372, 3
        %v1375 = vor.u32 %v1371, %v1374
        %v1376 = vsel %vm1257, %v1350, %v1375
        %v1377 = vshrl.u32 %v1214, 16
        %v1379 = vrot.slane %v1377, 2
        %v1380 = vshll.u32 %v1214, 16
        %v1382 = vrot.slane %v1380, 3
        %v1383 = vor.u32 %v1379, %v1382
        %v1384 = vsel %vm1257, %v1358, %v1383
        %v1385 = vshrl.u32 %v1254, 16
        %v1387 = vrot.slane %v1385, 2
        %v1388 = vshll.u32 %v1254, 16
        %v1390 = vrot.slane %v1388, 3
        %v1391 = vor.u32 %v1387, %v1390
        %v1392 = vsel %vm1257, %v1366, %v1391
        %v1394 = vshrl.u32 %v1192, 16
        %v1396 = vrot.slane %v1394, 2
        %v1397 = vshll.u32 %v1192, 16
        %v1399 = vrot.slane %v1397, 3
        %v1400 = vor.u32 %v1396, %v1399
        %v1401 = vsel %vm1257, %v1375, %v1400
        %v1402 = vshll.u32 %v1216, 16
        %v1404 = vrot.slane %v1402, 3
        %v1405 = vsel %vm1257, %v1383, %v1404
        %v1406 = vshll.u32 %v1256, 16
        %v1408 = vrot.slane %v1406, 3
        %v1409 = vsel %vm1257, %v1391, %v1408
        %v1411 = vshll.u32 %v1190, 16
        %v1413 = vrot.slane %v1411, 3
        %v1414 = vsel %vm1257, %v1400, %v1413
        %v1427 = vld [vmem:[%s3] sm:$0xf]
        %v1428 = vld [vmem:[%s3 + $0x4] sm:$0xf]
        %v1429 = vld [vmem:[%s3 + $0x8] sm:$0xf]
        %v1430 = vld [vmem:[%s3 + $0xc] sm:$0xf]
        %v1431 = vld [vmem:[%s3 + $0x10] sm:$0xf]
        %v1432 = vld [vmem:[%s3 + $0x14] sm:$0xf]
        %v1433 = vld [vmem:[%s3 + $0x18] sm:$0xf]
        %v1434 = vld [vmem:[%s3 + $0x1c] sm:$0xf]
        %v1435 = vld [vmem:[%s3 + $0x20] sm:$0xf]
        %v1436 = vld [vmem:[%s3 + $0x24] sm:$0xf]
        %v1437 = vld [vmem:[%s3 + $0x28] sm:$0xf]
        %v1438 = vld [vmem:[%s3 + $0x2c] sm:$0xf]
        %v1439 = vld [vmem:[%s3 + $0x30] sm:$0xf]
        %v1440 = vld [vmem:[%s3 + $0x34] sm:$0xf]
        %v1441 = vld [vmem:[%s3 + $0x38] sm:$0xf]
        %v1442 = vld [vmem:[%s3 + $0x3c] sm:$0xf]
        %v1443 = vld [vmem:[%s3 + $0x40] sm:$0xf]
        %v1444 = vld [vmem:[%s3 + $0x44] sm:$0xf]
        %v1445 = vld [vmem:[%s3 + $0x48] sm:$0xf]
        %v1446 = vld [vmem:[%s3 + $0x4c] sm:$0xf]
        %v1447 = vld [vmem:[%s3 + $0x50] sm:$0xf]
        %v1448 = vld [vmem:[%s3 + $0x54] sm:$0xf]
        %v1449 = vld [vmem:[%s3 + $0x58] sm:$0xf]
        %v1450 = vld [vmem:[%s3 + $0x5c] sm:$0xf]
        %v1451 = vld [vmem:[%s3 + $0x60] sm:$0xf]
        %v1452 = vld [vmem:[%s3 + $0x64] sm:$0xf]
        %v1453 = vld [vmem:[%s3 + $0x68] sm:$0xf]
        %v1454 = vld [vmem:[%s3 + $0x6c] sm:$0xf]
        %v1455 = vld [vmem:[%s3 + $0x70] sm:$0xf]
        %v1456 = vld [vmem:[%s3 + $0x74] sm:$0xf]
        %v1457 = vld [vmem:[%s3 + $0x78] sm:$0xf]
        %v1458 = vld [vmem:[%s3 + $0x7c] sm:$0xf]
        %v1459 = vld [vmem:[%s3 + $0x80] sm:$0xf]
        %v1460 = vld [vmem:[%s3 + $0x84] sm:$0xf]
        %v1461 = vld [vmem:[%s3 + $0x88] sm:$0xf]
        %v1462 = vld [vmem:[%s3 + $0x8c] sm:$0xf]
        %v1463 = vld [vmem:[%s3 + $0x90] sm:$0xf]
        %v1464 = vld [vmem:[%s3 + $0x94] sm:$0xf]
        %v1465 = vld [vmem:[%s3 + $0x98] sm:$0xf]
        %v1466 = vld [vmem:[%s3 + $0x9c] sm:$0xf]
        %v1467 = vld [vmem:[%s3 + $0xa0] sm:$0xf]
        %v1468 = vld [vmem:[%s3 + $0xa4] sm:$0xf]
        %v1469 = vld [vmem:[%s3 + $0xa8] sm:$0xf]
        %v1470 = vld [vmem:[%s3 + $0xac] sm:$0xf]
        %v1471 = vld [vmem:[%s3 + $0xb0] sm:$0xf]
        %v1472 = vld [vmem:[%s3 + $0xb4] sm:$0xf]
        %v1473 = vld [vmem:[%s3 + $0xb8] sm:$0xf]
        %v1474 = vld [vmem:[%s3 + $0xbc] sm:$0xf]
        %v1475 = vld [vmem:[%s3 + $0xc0] sm:$0xf]
        %v1476 = vld [vmem:[%s3 + $0xc4] sm:$0xf]
        %v1477 = vld [vmem:[%s3 + $0xc8] sm:$0xf]
        %v1478 = vld [vmem:[%s3 + $0xcc] sm:$0xf]
        %v1479 = vld [vmem:[%s3 + $0xd0] sm:$0xf]
        %v1480 = vld [vmem:[%s3 + $0xd4] sm:$0xf]
        %v1481 = vld [vmem:[%s3 + $0xd8] sm:$0xf]
        %v1482 = vld [vmem:[%s3 + $0xdc] sm:$0xf]
        %v1483 = vld [vmem:[%s3 + $0xe0] sm:$0xf]
        %v1484 = vld [vmem:[%s3 + $0xe4] sm:$0xf]
        %v1485 = vld [vmem:[%s3 + $0xe8] sm:$0xf]
        %v1486 = vld [vmem:[%s3 + $0xec] sm:$0xf]
        %v1487 = vld [vmem:[%s3 + $0xf0] sm:$0xf]
        %v1488 = vld [vmem:[%s3 + $0xf4] sm:$0xf]
        %v1489 = vld [vmem:[%s3 + $0xf8] sm:$0xf]
        %v1490 = vld [vmem:[%s3 + $0xfc] sm:$0xf]
        %v1491 = vld [vmem:[%s3 + $0x100] sm:$0xf]
        %v1492 = vld [vmem:[%s3 + $0x104] sm:$0xf]
        %v1493 = vld [vmem:[%s3 + $0x108] sm:$0xf]
        %v1494 = vld [vmem:[%s3 + $0x10c] sm:$0xf]
        %v1495 = vld [vmem:[%s3 + $0x110] sm:$0xf]
        %v1496 = vld [vmem:[%s3 + $0x114] sm:$0xf]
        %v1497 = vld [vmem:[%s3 + $0x118] sm:$0xf]
        %v1498 = vld [vmem:[%s3 + $0x11c] sm:$0xf]
        %v1499 = vld [vmem:[%s3 + $0x120] sm:$0xf]
        %v1500 = vld [vmem:[%s3 + $0x124] sm:$0xf]
        %v1501 = vld [vmem:[%s3 + $0x128] sm:$0xf]
        %v1502 = vld [vmem:[%s3 + $0x12c] sm:$0xf]
        %v1503 = vld [vmem:[%s3 + $0x130] sm:$0xf]
        %v1504 = vld [vmem:[%s3 + $0x134] sm:$0xf]
        %v1505 = vld [vmem:[%s3 + $0x138] sm:$0xf]
        %v1506 = vld [vmem:[%s3 + $0x13c] sm:$0xf]
        %v1507 = vld [vmem:[%s3 + $0x140] sm:$0xf]
        %v1508 = vld [vmem:[%s3 + $0x144] sm:$0xf]
        %v1509 = vld [vmem:[%s3 + $0x148] sm:$0xf]
        %v1510 = vld [vmem:[%s3 + $0x14c] sm:$0xf]
        %v1511 = vld [vmem:[%s3 + $0x150] sm:$0xf]
        %v1512 = vld [vmem:[%s3 + $0x154] sm:$0xf]
        %v1513 = vld [vmem:[%s3 + $0x158] sm:$0xf]
        %v1514 = vld [vmem:[%s3 + $0x15c] sm:$0xf]
        %v1515 = vld [vmem:[%s3 + $0x160] sm:$0xf]
        %v1516 = vld [vmem:[%s3 + $0x164] sm:$0xf]
        %v1517 = vld [vmem:[%s3 + $0x168] sm:$0xf]
        %v1518 = vld [vmem:[%s3 + $0x16c] sm:$0xf]
        %v1519 = vld [vmem:[%s3 + $0x170] sm:$0xf]
        %v1520 = vld [vmem:[%s3 + $0x174] sm:$0xf]
        %v1521 = vld [vmem:[%s3 + $0x178] sm:$0xf]
        %v1522 = vld [vmem:[%s3 + $0x17c] sm:$0xf]
        %v1523 = vld [vmem:[%s3 + $0x180] sm:$0xf]
        %v1524 = vld [vmem:[%s3 + $0x184] sm:$0xf]
        %v1525 = vld [vmem:[%s3 + $0x188] sm:$0xf]
        %v1526 = vld [vmem:[%s3 + $0x18c] sm:$0xf]
        %v1527 = vld [vmem:[%s4] sm:$0x1]
        %v1529 = vlaneseq
        %v1530 = vshrl.u32 %v1529, 7
        %v1531 = vsub.s32 0, %v1530
        %v1532 = vrot.slane %v1527, %v1531
        %v1634 = vunpack.c.l.b16 %v1427
        %v1635 = vunpack.c.l.b16 %v1428
        %v1636 = vunpack.c.l.b16 %v1429
        %v1637 = vunpack.c.l.b16 %v1430
        %v1638 = vunpack.c.l.b16 %v1431
        %v1639 = vunpack.c.l.b16 %v1432
        %v1640 = vunpack.c.l.b16 %v1433
        %v1641 = vunpack.c.l.b16 %v1434
        %v1642 = vunpack.c.l.b16 %v1435
        %v1643 = vunpack.c.l.b16 %v1436
        %v1644 = vunpack.c.l.b16 %v1437
        %v1645 = vunpack.c.l.b16 %v1438
        %v1646 = vunpack.c.l.b16 %v1439
        %v1647 = vunpack.c.l.b16 %v1440
        %v1648 = vunpack.c.l.b16 %v1441
        %v1649 = vunpack.c.l.b16 %v1442
        %v1650 = vunpack.c.l.b16 %v1443
        %v1651 = vunpack.c.l.b16 %v1444
        %v1652 = vunpack.c.l.b16 %v1445
        %v1653 = vunpack.c.l.b16 %v1446
        %v1654 = vunpack.c.l.b16 %v1447
        %v1655 = vunpack.c.l.b16 %v1448
        %v1656 = vunpack.c.l.b16 %v1449
        %v1657 = vunpack.c.l.b16 %v1450
        %v1658 = vunpack.c.l.b16 %v1451
        %v1659 = vunpack.c.l.b16 %v1452
        %v1660 = vunpack.c.l.b16 %v1453
        %v1661 = vunpack.c.l.b16 %v1454
        %v1662 = vunpack.c.l.b16 %v1455
        %v1663 = vunpack.c.l.b16 %v1456
        %v1664 = vunpack.c.l.b16 %v1457
        %v1665 = vunpack.c.l.b16 %v1458
        %v1666 = vunpack.c.l.b16 %v1459
        %v1667 = vunpack.c.l.b16 %v1460
        %v1668 = vunpack.c.l.b16 %v1461
        %v1669 = vunpack.c.l.b16 %v1462
        %v1670 = vunpack.c.l.b16 %v1463
        %v1671 = vunpack.c.l.b16 %v1464
        %v1672 = vunpack.c.l.b16 %v1465
        %v1673 = vunpack.c.l.b16 %v1466
        %v1674 = vunpack.c.l.b16 %v1467
        %v1675 = vunpack.c.l.b16 %v1468
        %v1676 = vunpack.c.l.b16 %v1469
        %v1677 = vunpack.c.l.b16 %v1470
        %v1678 = vunpack.c.l.b16 %v1471
        %v1679 = vunpack.c.l.b16 %v1472
        %v1680 = vunpack.c.l.b16 %v1473
        %v1681 = vunpack.c.l.b16 %v1474
        %v1682 = vunpack.c.l.b16 %v1475
        %v1683 = vunpack.c.l.b16 %v1476
        %v1684 = vunpack.c.l.b16 %v1477
        %v1685 = vunpack.c.l.b16 %v1478
        %v1686 = vunpack.c.l.b16 %v1479
        %v1687 = vunpack.c.l.b16 %v1480
        %v1688 = vunpack.c.l.b16 %v1481
        %v1689 = vunpack.c.l.b16 %v1482
        %v1690 = vunpack.c.l.b16 %v1483
        %v1691 = vunpack.c.l.b16 %v1484
        %v1692 = vunpack.c.l.b16 %v1485
        %v1693 = vunpack.c.l.b16 %v1486
        %v1694 = vunpack.c.l.b16 %v1487
        %v1695 = vunpack.c.l.b16 %v1488
        %v1696 = vunpack.c.l.b16 %v1489
        %v1697 = vunpack.c.l.b16 %v1490
        %v1698 = vunpack.c.l.b16 %v1491
        %v1699 = vunpack.c.l.b16 %v1492
        %v1700 = vunpack.c.l.b16 %v1493
        %v1701 = vunpack.c.l.b16 %v1494
        %v1702 = vunpack.c.l.b16 %v1495
        %v1703 = vunpack.c.l.b16 %v1496
        %v1704 = vunpack.c.l.b16 %v1497
        %v1705 = vunpack.c.l.b16 %v1498
        %v1706 = vunpack.c.l.b16 %v1499
        %v1707 = vunpack.c.l.b16 %v1500
        %v1708 = vunpack.c.l.b16 %v1501
        %v1709 = vunpack.c.l.b16 %v1502
        %v1710 = vunpack.c.l.b16 %v1503
        %v1711 = vunpack.c.l.b16 %v1504
        %v1712 = vunpack.c.l.b16 %v1505
        %v1713 = vunpack.c.l.b16 %v1506
        %v1714 = vunpack.c.l.b16 %v1507
        %v1715 = vunpack.c.l.b16 %v1508
        %v1716 = vunpack.c.l.b16 %v1509
        %v1717 = vunpack.c.l.b16 %v1510
        %v1718 = vunpack.c.l.b16 %v1511
        %v1719 = vunpack.c.l.b16 %v1512
        %v1720 = vunpack.c.l.b16 %v1513
        %v1721 = vunpack.c.l.b16 %v1514
        %v1722 = vunpack.c.l.b16 %v1515
        %v1723 = vunpack.c.l.b16 %v1516
        %v1724 = vunpack.c.l.b16 %v1517
        %v1725 = vunpack.c.l.b16 %v1518
        %v1726 = vunpack.c.l.b16 %v1519
        %v1727 = vunpack.c.l.b16 %v1520
        %v1728 = vunpack.c.l.b16 %v1521
        %v1729 = vunpack.c.l.b16 %v1522
        %v1730 = vunpack.c.l.b16 %v1523
        %v1731 = vunpack.c.l.b16 %v1524
        %v1732 = vunpack.c.l.b16 %v1525
        %v1733 = vunpack.c.l.b16 %v1526
        %v1734 = vpack.c.b16 %v1635, %v1634
        %v1735 = vpack.c.b16 %v1637, %v1636
        %v1736 = vpack.c.b16 %v1639, %v1638
        %v1737 = vpack.c.b16 %v1641, %v1640
        %v1738 = vpack.c.b16 %v1643, %v1642
        %v1739 = vpack.c.b16 %v1645, %v1644
        %v1740 = vpack.c.b16 %v1647, %v1646
        %v1741 = vpack.c.b16 %v1649, %v1648
        %v1742 = vpack.c.b16 %v1651, %v1650
        %v1743 = vpack.c.b16 %v1653, %v1652
        %v1744 = vpack.c.b16 %v1655, %v1654
        %v1745 = vpack.c.b16 %v1657, %v1656
        %v1746 = vpack.c.b16 %v1659, %v1658
        %v1747 = vpack.c.b16 %v1661, %v1660
        %v1748 = vpack.c.b16 %v1663, %v1662
        %v1749 = vpack.c.b16 %v1665, %v1664
        %v1750 = vpack.c.b16 %v1667, %v1666
        %v1751 = vpack.c.b16 %v1669, %v1668
        %v1752 = vpack.c.b16 %v1671, %v1670
        %v1753 = vpack.c.b16 %v1673, %v1672
        %v1754 = vpack.c.b16 %v1675, %v1674
        %v1755 = vpack.c.b16 %v1677, %v1676
        %v1756 = vpack.c.b16 %v1679, %v1678
        %v1757 = vpack.c.b16 %v1681, %v1680
        %v1758 = vpack.c.b16 %v1683, %v1682
        %v1759 = vpack.c.b16 %v1685, %v1684
        %v1760 = vpack.c.b16 %v1687, %v1686
        %v1761 = vpack.c.b16 %v1689, %v1688
        %v1762 = vpack.c.b16 %v1691, %v1690
        %v1763 = vpack.c.b16 %v1693, %v1692
        %v1764 = vpack.c.b16 %v1695, %v1694
        %v1765 = vpack.c.b16 %v1697, %v1696
        %v1766 = vpack.c.b16 %v1699, %v1698
        %v1767 = vpack.c.b16 %v1701, %v1700
        %v1768 = vpack.c.b16 %v1703, %v1702
        %v1769 = vpack.c.b16 %v1705, %v1704
        %v1770 = vpack.c.b16 %v1707, %v1706
        %v1771 = vpack.c.b16 %v1709, %v1708
        %v1772 = vpack.c.b16 %v1711, %v1710
        %v1773 = vpack.c.b16 %v1713, %v1712
        %v1774 = vpack.c.b16 %v1715, %v1714
        %v1775 = vpack.c.b16 %v1717, %v1716
        %v1776 = vpack.c.b16 %v1719, %v1718
        %v1777 = vpack.c.b16 %v1721, %v1720
        %v1778 = vpack.c.b16 %v1723, %v1722
        %v1779 = vpack.c.b16 %v1725, %v1724
        %v1780 = vpack.c.b16 %v1727, %v1726
        %v1781 = vpack.c.b16 %v1729, %v1728
        %v1782 = vpack.c.b16 %v1731, %v1730
        %v1783 = vpack.c.b16 %v1733, %v1732
        %v1835 = vsel %vm900, %v1303, 0
        %v1838 = vsel %vm900, %v1327, 0
        %v1841 = vsel %vm900, %v1351, 0
        %v1844 = vsel %vm900, %v1376, 0
        %v1847 = vsel %vm900, %v1401, 0
        %v1850 = vsel %vm900, %v1414, 0
        %1852 = vmatprep.subr.bf16.mxu0 0
        %1853 = vmatpush1.bf16.msra.mxu0 %v1741
        %1854 = vmatprep.subr.bf16.mxu0 0
        %1855 = vmatpush1.bf16.msra.mxu0 %v1740
        %1856 = vmatprep.subr.bf16.mxu0 0
        %1857 = vmatpush1.bf16.msra.mxu0 %v1739
        %1858 = vmatprep.subr.bf16.mxu0 0
        %1859 = vmatpush1.bf16.msra.mxu0 %v1738
        %1860 = vmatprep.subr.bf16.mxu0 0
        %1861 = vmatpush1.bf16.msra.mxu0 %v1737
        %1862 = vmatprep.subr.bf16.mxu0 0
        %1863 = vmatpush1.bf16.msra.mxu0 %v1736
        %1864 = vmatprep.subr.bf16.mxu0 0
        %1865 = vmatpush1.bf16.msra.mxu0 %v1735
        %1866 = vmatprep.subr.bf16.mxu0 0
        %1867 = vmatpush1.bf16.msra.mxu0 %v1734
        %1868 = vmatprep.subr.bf16.mxu0 0
        %1869 = vmatpush2.bf16.msra.mxu0 %v1749
        %1870 = vmatprep.subr.bf16.mxu0 0
        %1871 = vmatpush2.bf16.msra.mxu0 %v1748
        %1872 = vmatprep.subr.bf16.mxu0 0
        %1873 = vmatpush2.bf16.msra.mxu0 %v1747
        %1874 = vmatprep.subr.bf16.mxu0 0
        %1875 = vmatpush2.bf16.msra.mxu0 %v1746
        %1876 = vmatprep.subr.bf16.mxu0 0
        %1877 = vmatpush2.bf16.msra.mxu0 %v1745
        %1878 = vmatprep.subr.bf16.mxu0 0
        %1879 = vmatpush2.bf16.msra.mxu0 %v1744
        %1880 = vmatprep.subr.bf16.mxu0 0
        %1881 = vmatpush2.bf16.msra.mxu0 %v1743
        %1882 = vmatprep.subr.bf16.mxu0 0
        %1883 = vmatpush2.bf16.msra.mxu0 %v1742
        %1884 = vmatprep.mubr.bf16.mxu0 %v976
        %1885 = vmatmul.mubr.bf16.gmra.mxu0 %v928
        %v1886 = vpop.f32.mrf.mxu0
        %v1887 = vadd.f32 %v1532, %v1886
        %v1888 = vpop.f32.mrf.mxu0
        %v1889 = vpop.f32.mrf.mxu0
        %v1890 = vadd.f32 %v1532, %v1889
        %v1891 = vpop.f32.mrf.mxu0
        %1892 = vmatprep.mubr.bf16.mxu0 %v979
        %1893 = vmatmul.mubr.bf16.gmra.mxu0 %v931
        %v1894 = vpop.f32.mrf.mxu0
        %v1895 = vadd.f32 %v1532, %v1894
        %v1896 = vpop.f32.mrf.mxu0
        %v1897 = vpop.f32.mrf.mxu0
        %v1898 = vadd.f32 %v1532, %v1897
        %v1899 = vpop.f32.mrf.mxu0
        %1900 = vmatprep.mubr.bf16.mxu0 %v982
        %1901 = vmatmul.mubr.bf16.gmra.mxu0 %v934
        %v1902 = vpop.f32.mrf.mxu0
        %v1903 = vadd.f32 %v1532, %v1902
        %v1904 = vpop.f32.mrf.mxu0
        %v1905 = vpop.f32.mrf.mxu0
        %v1906 = vadd.f32 %v1532, %v1905
        %v1907 = vpop.f32.mrf.mxu0
        %1908 = vmatprep.mubr.bf16.mxu0 %v985
        %1909 = vmatmul.mubr.bf16.gmra.mxu0 %v937
        %v1910 = vpop.f32.mrf.mxu0
        %v1911 = vadd.f32 %v1532, %v1910
        %v1912 = vpop.f32.mrf.mxu0
        %v1913 = vpop.f32.mrf.mxu0
        %v1914 = vadd.f32 %v1532, %v1913
        %v1915 = vpop.f32.mrf.mxu0
        %1916 = vmatprep.mubr.bf16.mxu0 %v988
        %1917 = vmatmul.mubr.bf16.gmra.mxu0 %v940
        %v1918 = vpop.f32.mrf.mxu0
        %v1919 = vadd.f32 %v1532, %v1918
        %v1920 = vpop.f32.mrf.mxu0
        %v1921 = vpop.f32.mrf.mxu0
        %v1922 = vadd.f32 %v1532, %v1921
        %v1923 = vpop.f32.mrf.mxu0
        %1924 = vmatprep.mubr.bf16.mxu0 %v991
        %1925 = vmatmul.mubr.bf16.gmra.mxu0 %v943
        %v1926 = vpop.f32.mrf.mxu0
        %v1927 = vadd.f32 %v1532, %v1926
        %v1928 = vpop.f32.mrf.mxu0
        %v1929 = vpop.f32.mrf.mxu0
        %v1930 = vadd.f32 %v1532, %v1929
        %v1931 = vpop.f32.mrf.mxu0
        %1932 = vdwg.mxu0
        %1933 = vmatprep.subr.bf16.mxu0 0
        %1934 = vmatpush1.bf16.msra.mxu0 %v1757
        %1935 = vmatprep.subr.bf16.mxu0 0
        %1936 = vmatpush1.bf16.msra.mxu0 %v1756
        %1937 = vmatprep.subr.bf16.mxu0 0
        %1938 = vmatpush1.bf16.msra.mxu0 %v1755
        %1939 = vmatprep.subr.bf16.mxu0 0
        %1940 = vmatpush1.bf16.msra.mxu0 %v1754
        %1941 = vmatprep.subr.bf16.mxu0 0
        %1942 = vmatpush1.bf16.msra.mxu0 %v1753
        %1943 = vmatprep.subr.bf16.mxu0 0
        %1944 = vmatpush1.bf16.msra.mxu0 %v1752
        %1945 = vmatprep.subr.bf16.mxu0 0
        %1946 = vmatpush1.bf16.msra.mxu0 %v1751
        %1947 = vmatprep.subr.bf16.mxu0 0
        %1948 = vmatpush1.bf16.msra.mxu0 %v1750
        %1949 = vmatprep.subr.bf16.mxu0 0
        %1950 = vmatpush2.bf16.msra.mxu0 %v1765
        %1951 = vmatprep.subr.bf16.mxu0 0
        %1952 = vmatpush2.bf16.msra.mxu0 %v1764
        %1953 = vmatprep.subr.bf16.mxu0 0
        %1954 = vmatpush2.bf16.msra.mxu0 %v1763
        %1955 = vmatprep.subr.bf16.mxu0 0
        %1956 = vmatpush2.bf16.msra.mxu0 %v1762
        %1957 = vmatprep.subr.bf16.mxu0 0
        %1958 = vmatpush2.bf16.msra.mxu0 %v1761
        %1959 = vmatprep.subr.bf16.mxu0 0
        %1960 = vmatpush2.bf16.msra.mxu0 %v1760
        %1961 = vmatprep.subr.bf16.mxu0 0
        %1962 = vmatpush2.bf16.msra.mxu0 %v1759
        %1963 = vmatprep.subr.bf16.mxu0 0
        %1964 = vmatpush2.bf16.msra.mxu0 %v1758
        %1965 = vmatprep.mubr.bf16.mxu0 %v1072
        %1966 = vmatmul.mubr.bf16.gmra.mxu0 %v1024
        %v1967 = vpop.f32.mrf.mxu0
        %v1968 = vadd.f32 %v1887, %v1967
        %v1969 = vpop.f32.mrf.mxu0
        %v1970 = vpop.f32.mrf.mxu0
        %v1971 = vadd.f32 %v1890, %v1970
        %v1972 = vpop.f32.mrf.mxu0
        %1973 = vmatprep.mubr.bf16.mxu0 %v1075
        %1974 = vmatmul.mubr.bf16.gmra.mxu0 %v1027
        %v1975 = vpop.f32.mrf.mxu0
        %v1976 = vadd.f32 %v1895, %v1975
        %v1977 = vpop.f32.mrf.mxu0
        %v1978 = vpop.f32.mrf.mxu0
        %v1979 = vadd.f32 %v1898, %v1978
        %v1980 = vpop.f32.mrf.mxu0
        %1981 = vmatprep.mubr.bf16.mxu0 %v1078
        %1982 = vmatmul.mubr.bf16.gmra.mxu0 %v1030
        %v1983 = vpop.f32.mrf.mxu0
        %v1984 = vadd.f32 %v1903, %v1983
        %v1985 = vpop.f32.mrf.mxu0
        %v1986 = vpop.f32.mrf.mxu0
        %v1987 = vadd.f32 %v1906, %v1986
        %v1988 = vpop.f32.mrf.mxu0
        %1989 = vmatprep.mubr.bf16.mxu0 %v1081
        %1990 = vmatmul.mubr.bf16.gmra.mxu0 %v1033
        %v1991 = vpop.f32.mrf.mxu0
        %v1992 = vadd.f32 %v1911, %v1991
        %v1993 = vpop.f32.mrf.mxu0
        %v1994 = vpop.f32.mrf.mxu0
        %v1995 = vadd.f32 %v1914, %v1994
        %v1996 = vpop.f32.mrf.mxu0
        %1997 = vmatprep.mubr.bf16.mxu0 %v1084
        %1998 = vmatmul.mubr.bf16.gmra.mxu0 %v1036
        %v1999 = vpop.f32.mrf.mxu0
        %v2000 = vadd.f32 %v1919, %v1999
        %v2001 = vpop.f32.mrf.mxu0
        %v2002 = vpop.f32.mrf.mxu0
        %v2003 = vadd.f32 %v1922, %v2002
        %v2004 = vpop.f32.mrf.mxu0
        %2005 = vmatprep.mubr.bf16.mxu0 %v1087
        %2006 = vmatmul.mubr.bf16.gmra.mxu0 %v1039
        %v2007 = vpop.f32.mrf.mxu0
        %v2008 = vadd.f32 %v1927, %v2007
        %v2009 = vpop.f32.mrf.mxu0
        %v2010 = vpop.f32.mrf.mxu0
        %v2011 = vadd.f32 %v1930, %v2010
        %v2012 = vpop.f32.mrf.mxu0
        %2013 = vdwg.mxu0
        %2014 = vmatprep.subr.bf16.mxu0 0
        %2015 = vmatpush1.bf16.msra.mxu0 %v1773
        %2016 = vmatprep.subr.bf16.mxu0 0
        %2017 = vmatpush1.bf16.msra.mxu0 %v1772
        %2018 = vmatprep.subr.bf16.mxu0 0
        %2019 = vmatpush1.bf16.msra.mxu0 %v1771
        %2020 = vmatprep.subr.bf16.mxu0 0
        %2021 = vmatpush1.bf16.msra.mxu0 %v1770
        %2022 = vmatprep.subr.bf16.mxu0 0
        %2023 = vmatpush1.bf16.msra.mxu0 %v1769
        %2024 = vmatprep.subr.bf16.mxu0 0
        %2025 = vmatpush1.bf16.msra.mxu0 %v1768
        %2026 = vmatprep.subr.bf16.mxu0 0
        %2027 = vmatpush1.bf16.msra.mxu0 %v1767
        %2028 = vmatprep.subr.bf16.mxu0 0
        %2029 = vmatpush1.bf16.msra.mxu0 %v1766
        %2030 = vmatprep.subr.bf16.mxu0 0
        %2031 = vmatpush2.bf16.msra.mxu0 %v1781
        %2032 = vmatprep.subr.bf16.mxu0 0
        %2033 = vmatpush2.bf16.msra.mxu0 %v1780
        %2034 = vmatprep.subr.bf16.mxu0 0
        %2035 = vmatpush2.bf16.msra.mxu0 %v1779
        %2036 = vmatprep.subr.bf16.mxu0 0
        %2037 = vmatpush2.bf16.msra.mxu0 %v1778
        %2038 = vmatprep.subr.bf16.mxu0 0
        %2039 = vmatpush2.bf16.msra.mxu0 %v1777
        %2040 = vmatprep.subr.bf16.mxu0 0
        %2041 = vmatpush2.bf16.msra.mxu0 %v1776
        %2042 = vmatprep.subr.bf16.mxu0 0
        %2043 = vmatpush2.bf16.msra.mxu0 %v1775
        %2044 = vmatprep.subr.bf16.mxu0 0
        %2045 = vmatpush2.bf16.msra.mxu0 %v1774
        %2046 = vmatprep.mubr.bf16.mxu0 %v1287
        %2047 = vmatmul.mubr.bf16.gmra.mxu0 %v1272
        %v2048 = vpop.f32.mrf.mxu0
        %v2049 = vadd.f32 %v1968, %v2048
        %v2050 = vpop.f32.mrf.mxu0
        %v2051 = vpop.f32.mrf.mxu0
        %v2052 = vadd.f32 %v1971, %v2051
        %v2053 = vpop.f32.mrf.mxu0
        %2054 = vmatprep.mubr.bf16.mxu0 %v1319
        %2055 = vmatmul.mubr.bf16.gmra.mxu0 %v1311
        %v2056 = vpop.f32.mrf.mxu0
        %v2057 = vadd.f32 %v1976, %v2056
        %v2058 = vpop.f32.mrf.mxu0
        %v2059 = vpop.f32.mrf.mxu0
        %v2060 = vadd.f32 %v1979, %v2059
        %v2061 = vpop.f32.mrf.mxu0
        %2062 = vmatprep.mubr.bf16.mxu0 %v1343
        %2063 = vmatmul.mubr.bf16.gmra.mxu0 %v1335
        %v2064 = vpop.f32.mrf.mxu0
        %v2065 = vadd.f32 %v1984, %v2064
        %v2066 = vpop.f32.mrf.mxu0
        %v2067 = vpop.f32.mrf.mxu0
        %v2068 = vadd.f32 %v1987, %v2067
        %v2069 = vpop.f32.mrf.mxu0
        %2070 = vmatprep.mubr.bf16.mxu0 %v1367
        %2071 = vmatmul.mubr.bf16.gmra.mxu0 %v1359
        %v2072 = vpop.f32.mrf.mxu0
        %v2073 = vadd.f32 %v1992, %v2072
        %v2074 = vpop.f32.mrf.mxu0
        %v2075 = vpop.f32.mrf.mxu0
        %v2076 = vadd.f32 %v1995, %v2075
        %v2077 = vpop.f32.mrf.mxu0
        %2078 = vmatprep.mubr.bf16.mxu0 %v1392
        %2079 = vmatmul.mubr.bf16.gmra.mxu0 %v1384
        %v2080 = vpop.f32.mrf.mxu0
        %v2081 = vadd.f32 %v2000, %v2080
        %v2082 = vpop.f32.mrf.mxu0
        %v2083 = vpop.f32.mrf.mxu0
        %v2084 = vadd.f32 %v2003, %v2083
        %v2085 = vpop.f32.mrf.mxu0
        %2086 = vmatprep.mubr.bf16.mxu0 %v1409
        %2087 = vmatmul.mubr.bf16.gmra.mxu0 %v1405
        %v2088 = vpop.f32.mrf.mxu0
        %v2089 = vadd.f32 %v2008, %v2088
        %v2090 = vpop.f32.mrf.mxu0
        %v2091 = vpop.f32.mrf.mxu0
        %v2092 = vadd.f32 %v2011, %v2091
        %v2093 = vpop.f32.mrf.mxu0
        %2094 = vdwg.mxu0
        %2095 = vmatprep.subr.bf16.mxu0 0
        %2096 = vmatpush1.bf16.msra.mxu0 0
        %2097 = vmatprep.subr.bf16.mxu0 0
        %2098 = vmatpush1.bf16.msra.mxu0 0
        %2099 = vmatprep.subr.bf16.mxu0 0
        %2100 = vmatpush1.bf16.msra.mxu0 0
        %2101 = vmatprep.subr.bf16.mxu0 0
        %2102 = vmatpush1.bf16.msra.mxu0 0
        %2103 = vmatprep.subr.bf16.mxu0 0
        %2104 = vmatpush1.bf16.msra.mxu0 0
        %2105 = vmatprep.subr.bf16.mxu0 0
        %2106 = vmatpush1.bf16.msra.mxu0 0
        %2107 = vmatprep.subr.bf16.mxu0 0
        %2108 = vmatpush1.bf16.msra.mxu0 %v1783
        %2109 = vmatprep.subr.bf16.mxu0 0
        %2110 = vmatpush1.bf16.msra.mxu0 %v1782
        %2111 = vmatprep.subr.bf16.mxu0 0
        %2112 = vmatpush2.bf16.msra.mxu0 0
        %2113 = vmatprep.subr.bf16.mxu0 0
        %2114 = vmatpush2.bf16.msra.mxu0 0
        %2115 = vmatprep.subr.bf16.mxu0 0
        %2116 = vmatpush2.bf16.msra.mxu0 0
        %2117 = vmatprep.subr.bf16.mxu0 0
        %2118 = vmatpush2.bf16.msra.mxu0 0
        %2119 = vmatprep.subr.bf16.mxu0 0
        %2120 = vmatpush2.bf16.msra.mxu0 0
        %2121 = vmatprep.subr.bf16.mxu0 0
        %2122 = vmatpush2.bf16.msra.mxu0 0
        %2123 = vmatprep.subr.bf16.mxu0 0
        %2124 = vmatpush2.bf16.msra.mxu0 0
        %2125 = vmatprep.subr.bf16.mxu0 0
        %2126 = vmatpush2.bf16.msra.mxu0 0
        %2127 = vmatprep.mubr.bf16.mxu0 0
        %2128 = vmatmul.mubr.bf16.gmra.mxu0 %v1835
        %v2129 = vpop.f32.mrf.mxu0
        %v2130 = vadd.f32 %v2049, %v2129
        %v2131 = vpop.f32.mrf.mxu0
        %v2132 = vpop.f32.mrf.mxu0
        %v2133 = vadd.f32 %v2052, %v2132
        %v2134 = vpop.f32.mrf.mxu0
        %2135 = vmatprep.mubr.bf16.mxu0 0
        %2136 = vmatmul.mubr.bf16.gmra.mxu0 %v1838
        %v2137 = vpop.f32.mrf.mxu0
        %v2138 = vadd.f32 %v2057, %v2137
        %v2139 = vpop.f32.mrf.mxu0
        %v2140 = vpop.f32.mrf.mxu0
        %v2141 = vadd.f32 %v2060, %v2140
        %v2142 = vpop.f32.mrf.mxu0
        %2143 = vmatprep.mubr.bf16.mxu0 0
        %2144 = vmatmul.mubr.bf16.gmra.mxu0 %v1841
        %v2145 = vpop.f32.mrf.mxu0
        %v2146 = vadd.f32 %v2065, %v2145
        %v2147 = vpop.f32.mrf.mxu0
        %v2148 = vpop.f32.mrf.mxu0
        %v2149 = vadd.f32 %v2068, %v2148
        %v2150 = vpop.f32.mrf.mxu0
        %2151 = vmatprep.mubr.bf16.mxu0 0
        %2152 = vmatmul.mubr.bf16.gmra.mxu0 %v1844
        %v2153 = vpop.f32.mrf.mxu0
        %v2154 = vadd.f32 %v2073, %v2153
        %v2155 = vpop.f32.mrf.mxu0
        %v2156 = vpop.f32.mrf.mxu0
        %v2157 = vadd.f32 %v2076, %v2156
        %v2158 = vpop.f32.mrf.mxu0
        %2159 = vmatprep.mubr.bf16.mxu0 0
        %2160 = vmatmul.mubr.bf16.gmra.mxu0 %v1847
        %v2161 = vpop.f32.mrf.mxu0
        %v2162 = vadd.f32 %v2081, %v2161
        %v2163 = vpop.f32.mrf.mxu0
        %v2164 = vpop.f32.mrf.mxu0
        %v2165 = vadd.f32 %v2084, %v2164
        %v2166 = vpop.f32.mrf.mxu0
        %2167 = vmatprep.mubr.bf16.mxu0 0
        %2168 = vmatmul.mubr.bf16.gmra.mxu0 %v1850
        %v2169 = vpop.f32.mrf.mxu0
        %v2170 = vadd.f32 %v2089, %v2169
        %v2171 = vpop.f32.mrf.mxu0
        %v2172 = vpop.f32.mrf.mxu0
        %v2173 = vadd.f32 %v2092, %v2172
        %v2174 = vpop.f32.mrf.mxu0
        %2175 = vdwg.mxu0
        %v2176 = vmax.f32 %v2130, 0.0
        %v2177 = vmax.f32 %v2133, 0.0
        %v2178 = vmax.f32 %v2138, 0.0
        %v2179 = vmax.f32 %v2141, 0.0
        %v2180 = vmax.f32 %v2146, 0.0
        %v2181 = vmax.f32 %v2149, 0.0
        %v2182 = vmax.f32 %v2154, 0.0
        %v2183 = vmax.f32 %v2157, 0.0
        %v2184 = vmax.f32 %v2162, 0.0
        %v2185 = vmax.f32 %v2165, 0.0
        %v2186 = vmax.f32 %v2170, 0.0
        %v2187 = vmax.f32 %v2173, 0.0
        %v2190 = vrot.slane %v2177, 4
        %v2191 = vrot.slane %v2178, 4
        %v2192 = vsel %vm337, %v2190, %v2191
        %v2196 = vrot.slane %v2180, 4
        %v2197 = vrot.slane %v2181, 4
        %v2198 = vsel %vm337, %v2196, %v2197
        %v2202 = vrot.slane %v2183, 4
        %v2203 = vrot.slane %v2184, 4
        %v2204 = vsel %vm337, %v2202, %v2203
        %v2208 = vrot.slane %v2186, 4
        %v2209 = vrot.slane %v2187, 4
        %v2210 = vsel %vm337, %v2208, %v2209
        %2212 = vst.msk [vmem:[%s217] sm:$0xff] %vm913, %v2176
        %2213 = vst.msk [vmem:[%s217 + $0x8] sm:$0xff] %vm913, %v2192
        %2214 = vst.msk [vmem:[%s217 + $0x10] sm:$0xff] %vm913, %v2179
        %2215 = vst.msk [vmem:[%s217 + $0x18] sm:$0xff] %vm913, %v2198
        %2216 = vst.msk [vmem:[%s217 + $0x20] sm:$0xff] %vm913, %v2182
        %2217 = vst.msk [vmem:[%s217 + $0x28] sm:$0xff] %vm913, %v2204
        %2218 = vst.msk [vmem:[%s217 + $0x30] sm:$0xff] %vm913, %v2185
        %2219 = vst.msk [vmem:[%s217 + $0x38] sm:$0xff] %vm913, %v2210
        %s2220 = sand.u32 %s137, 1
        %s2221 = scalar_lea.sflag [#allocation3], %s2220
        %s2222 = sand.u32 %s137, 1
        %s2223 = smul.addr %s2222, 64
        %s2224 = scalar_lea.vmem [#allocation2], %s2223
        // Predicated region
        $region41: #{sequential_forward.1} parent=39 // pred_check
          %p2225 = pneg %p147
        $region42: #{sequential_forward.1} parent=39 // pred_check_branch
          %2227 = sbr.rel (%p2225) target = $region44
        $region43: #{sequential_forward.1} parent=39 // pred_region
          %s2229 = ssub.s32 1024, 1024
          %2230 = vsyncadd %s2221, %s2229
          %s2231 = smul.addr %s19, 8
          %s2232 = smul.addr %s2231, 128
          %s2233 = scalar_lea.hbm %s5, %s2232
          %s2234 = sshll.u32 %s2224, 4
          %s2235 = int_to_ptr.vmem [resolvable:$true] %s2234
          %2240 = dma.vmem_to_hbm [thread:$0]  %s2235, 1024, %s2233, %s2221, 128, 128, 8
        $region44: #{sequential_forward.1} parent=39 // pred_fallthru
          _
      $region40: #{sequential_forward.1} parent=5 // pred_fallthru
        _
      %p2241 = scmp.le.s32.totalorder 2, %s14
      // Predicated region
      $region45: #{sequential_forward.1} parent=5 // pred_check
        %p2242 = pneg %p2241
      $region46: #{sequential_forward.1} parent=5 // pred_check_branch
        %2244 = sbr.rel (%p2242) target = $region48
      $region47: #{sequential_forward.1} parent=5 // pred_region
        %s2245 = ssub.s32 %s14, 2
        // Predicated region
        $region49: #{sequential_forward.1} parent=47 // pred_check
          %p2246 = pneg %p153
        $region50: #{sequential_forward.1} parent=47 // pred_check_branch
          %2248 = sbr.rel (%p2246) target = $region52
        $region51: #{sequential_forward.1} parent=47 // pred_region
          %s2249 = sand.u32 %s138, 1
          %s2250 = scalar_lea.sflag [#allocation3], %s2249
          %s2251 = sand.u32 %s138, 1
          %s2252 = smul.addr %s2251, 64
          %s2253 = scalar_lea.vmem [#allocation2], %s2252
          %2254 = dma.done %s2250, 1024
        $region52: #{sequential_forward.1} parent=47 // pred_fallthru
          _
      $region48: #{sequential_forward.1} parent=5 // pred_fallthru
        _
    $region6: #{sequential_forward.1} parent=1 // loop_footer
      %s18 = sadd.s32 1, %s14
    $region7: #{sequential_forward.1} parent=1 // loop_footer_branch
      %13 = sbr.rel target = $region3
    $region8: #{sequential_forward.1} parent=1 // loop_exit
      _
    %2255 = vsyncpa [#allocation3], 1
    %s2256 = scalar_lea.sflag [#allocation3], 1
    %2257 = vsyncpa %s2256, 1

</llo_original>
